<compile_context>
chip_gen: v7x
topology: tpu7x:2x2x1
jax: 0.10.0
libtpu: 0.0.40
codegen_flags: <defaults>
</compile_context>

<pallas_src>
import math

import jax
import jax.numpy as jnp
from jax.experimental import pallas as pl
from jax.experimental.pallas import tpu as pltpu

# ----------------------------- configuration -------------------------------
B = 2            # batch
C = 3            # input channels (module hardcodes 3*P*P in prompt init)
IMG = 16         # image height/width
P = 8            # patch size
D = 32           # embed_dim
NH = 4           # num heads
HD = D // NH     # head dim
DEPTH = 2        # number of transformer blocks
MLP_H = 4 * D    # MLP hidden dim
PROMPT_NUM = 2   # prompt tokens (Shallow VPT, projection=-1 -> Identity)
NUM_CLASSES = 10
LN_EPS = 1e-6

GH = IMG // P
N_PATCH = GH * GH               # 4
T_TOK = 1 + N_PATCH             # cls + patches = 5
T_ALL = T_TOK + PROMPT_NUM      # with prompts   = 7
K_PE = C * P * P                # 192
R = B * T_ALL                   # 14 real token rows
RP = ((R + 15) // 16) * 16      # 16: padded rows (aligned bf16 sublane groups)
S_W = NH * RP                   # 64: head-blocked score width

MM_DTYPE = jnp.bfloat16         # MXU operand dtype (accumulation stays f32)

# --------- packed-slab row offsets (narrow bf16 slab, 32 lanes) -------------
PE_OFF = 0                      # patch-embed weight  (K_PE, D)
HEAD_OFF = PE_OFF + K_PE        # 192: head weight    (D, NUM_CLASSES)
CM_OFF = HEAD_OFF + D           # 224: head col mask  (S_W, D)
PROJ_OFF = CM_OFF + S_W         # 288: attn proj      (DEPTH, D, D)
FC2_OFF = PROJ_OFF + DEPTH * D  # 352: fc2            (DEPTH, MLP_H, D)
WN_ROWS = FC2_OFF + DEPTH * MLP_H   # 608
WW_ROWS = DEPTH * 2 * D             # 128  (wide bf16 slab: qkv_w + fc1_w)
VB_ROWS = DEPTH * 8 + 8             # 24   (f32 vector slab: LN params + biases)


# ------------------------------- helpers ------------------------------------
def _layernorm(v, g, b, eps=LN_EPS):
    mu = jnp.mean(v, axis=-1, keepdims=True)
    var = jnp.mean((v - mu) ** 2, axis=-1, keepdims=True)
    return (v - mu) * jax.lax.rsqrt(var + eps) * g + b


# ------------------------------- fused kernel --------------------------------
def fused_vit_kernel(pf_ref, bm_ref, wn_ref, ww_ref, vb_ref, o_ref):
    f32 = jnp.float32
    base = bm_ref[:, 0:D]                         # (RP, D)   additive token base
    neg_mask = bm_ref[:, D:D + S_W]               # (RP, S_W) batch/pad mask 0/-1e30
    col_mask = wn_ref[CM_OFF:CM_OFF + S_W, :]     # (S_W, D)  head block-diag 0/1

    # --- patch embedding: cls/prompt/pad rows of pf are zero; their additive
    #     parts (cls+pos, prompts) live in `base`.
    x = jnp.dot(pf_ref[...], wn_ref[PE_OFF:PE_OFF + K_PE, :],
                preferred_element_type=f32) + base                 # (RP, D) f32

    for layer in range(DEPTH):                    # depth unrolled in one kernel
        vecs = vb_ref[layer * 8:(layer + 1) * 8, :]                # (8, 128) f32
        ln1_g, ln1_b = vecs[0:1, 0:D], vecs[1:2, 0:D]
        qkv_b = vecs[2:3, 0:3 * D]
        proj_b = vecs[3:4, 0:D]
        ln2_g, ln2_b = vecs[4:5, 0:D], vecs[5:6, 0:D]
        fc1_b = vecs[6:7, 0:MLP_H]
        fc2_b = vecs[7:8, 0:D]

        # ----------------------------- attention ----------------------------
        h = _layernorm(x, ln1_g, ln1_b).astype(MM_DTYPE)
        qkv_w = ww_ref[layer * 2 * D: layer * 2 * D + D, 0:3 * D]  # (D, 3D)
        # 1/sqrt(HD) is folded into the q columns of qkv_w/qkv_b wrapper-side;
        # one f32->bf16 cast covers q, k and v.
        qkv = (jnp.dot(h, qkv_w, preferred_element_type=f32) + qkv_b
               ).astype(MM_DTYPE)                                  # (RP, 3D)
        q = qkv[:, 0:D]
        k = qkv[:, D:2 * D]
        v = qkv[:, 2 * D:3 * D]

        # Head-blocked block-diagonal K̂,V̂: one score matmul and one value
        # matmul cover all NH heads and the whole batch (VPU tile+mask work
        # overlaps the MXU).
        k_hat = jnp.concatenate([k] * NH, axis=0) * col_mask       # (S_W, D)
        v_hat = jnp.concatenate([v] * NH, axis=0) * col_mask       # (S_W, D)
        s = jax.lax.dot_general(q, k_hat, (((1,), (1,)), ((), ())),
                                preferred_element_type=f32) + neg_mask  # (RP,S_W)
        m = jnp.max(s, axis=-1, keepdims=True)    # one row max, valid per block
        e = jnp.exp(s - m).astype(MM_DTYPE)
        # Fused [unnormalised output | per-head softmax denominator] matmul.
        od = jnp.dot(e, jnp.concatenate([v_hat, col_mask], axis=-1),
                     preferred_element_type=f32)                   # (RP, 2D)
        o_attn = (od[:, 0:D] * pl.reciprocal(od[:, D:2 * D], approx=True)
                  ).astype(MM_DTYPE)              # head-concatenated (RP, D)
        proj_w = wn_ref[PROJ_OFF + layer * D: PROJ_OFF + (layer + 1) * D, :]
        x = x + jnp.dot(o_attn, proj_w, preferred_element_type=f32) + proj_b

        # ------------------------------- MLP ---------------------------------
        h2 = _layernorm(x, ln2_g, ln2_b).astype(MM_DTYPE)
        fc1_w = ww_ref[layer * 2 * D + D:(layer + 1) * 2 * D, :]   # (D, MLP_H)
        h2 = jnp.dot(h2, fc1_w, preferred_element_type=f32) + fc1_b
        # tanh GELU -> EUP slot (perf review); PyTorch default is exact erf GELU,
        # difference is far below the bf16 tolerance used for verification.
        h2 = jax.nn.gelu(h2, approximate=True).astype(MM_DTYPE)
        fc2_w = wn_ref[FC2_OFF + layer * MLP_H:FC2_OFF + (layer + 1) * MLP_H, :]
        x = x + jnp.dot(h2, fc2_w, preferred_element_type=f32) + fc2_b

    # --- final LayerNorm + head on the cls rows only (rows 0..B-1), one store -
    norm_g = vb_ref[DEPTH * 8 + 0:DEPTH * 8 + 1, 0:D]
    norm_b = vb_ref[DEPTH * 8 + 1:DEPTH * 8 + 2, 0:D]
    head_b = vb_ref[DEPTH * 8 + 2:DEPTH * 8 + 3, 0:NUM_CLASSES]
    cls = _layernorm(x[0:B, :], norm_g, norm_b).astype(MM_DTYPE)
    head_w = wn_ref[HEAD_OFF:HEAD_OFF + D, 0:NUM_CLASSES]
    o_ref[...] = jnp.dot(cls, head_w, preferred_element_type=f32) + head_b


# ------------------------------- wrapper --------------------------------------
def _patchify(x_nchw):
    b = x_nchw.shape[0]
    p_ = x_nchw.reshape(b, C, GH, P, GH, P).transpose(0, 2, 4, 1, 3, 5)
    return p_.reshape(b, N_PATCH, K_PE)


def _pack_slabs(params):
    """Pack all weights into 3 DMA slabs (2x bf16, 1x f32)."""
    scale = HD ** -0.5
    qscale = jnp.concatenate(
        [jnp.full((D,), scale, jnp.float32), jnp.ones((2 * D,), jnp.float32)])

    # narrow bf16 slab (32 lanes)
    wn = jnp.zeros((WN_ROWS, D), MM_DTYPE)
    wn = wn.at[PE_OFF:PE_OFF + K_PE, :].set(params["pe_w"].astype(MM_DTYPE))
    wn = wn.at[HEAD_OFF:HEAD_OFF + D, :NUM_CLASSES].set(
        params["head_w"].astype(MM_DTYPE))
    col_mask = (jnp.arange(S_W)[:, None] // RP == jnp.arange(D)[None, :] // HD)
    wn = wn.at[CM_OFF:CM_OFF + S_W, :].set(col_mask.astype(MM_DTYPE))

    ww = jnp.zeros((WW_ROWS, MLP_H), MM_DTYPE)         # wide bf16 slab (128 lanes)
    vb = jnp.zeros((VB_ROWS, MLP_H), jnp.float32)      # f32 LN/bias slab

    for l, bp in enumerate(params["blocks"]):
        wn = wn.at[PROJ_OFF + l * D:PROJ_OFF + (l + 1) * D, :].set(
            bp["proj_w"].astype(MM_DTYPE))
        wn = wn.at[FC2_OFF + l * MLP_H:FC2_OFF + (l + 1) * MLP_H, :].set(
            bp["fc2_w"].astype(MM_DTYPE))
        ww = ww.at[l * 2 * D:l * 2 * D + D, :3 * D].set(
            (bp["qkv_w"] * qscale[None, :]).astype(MM_DTYPE))   # fold 1/sqrt(HD)
        ww = ww.at[l * 2 * D + D:(l + 1) * 2 * D, :].set(
            bp["fc1_w"].astype(MM_DTYPE))
        vb = vb.at[l * 8 + 0, :D].set(bp["ln1_g"][0])
        vb = vb.at[l * 8 + 1, :D].set(bp["ln1_b"][0])
        vb = vb.at[l * 8 + 2, :3 * D].set(bp["qkv_b"][0] * qscale)
        vb = vb.at[l * 8 + 3, :D].set(bp["proj_b"][0])
        vb = vb.at[l * 8 + 4, :D].set(bp["ln2_g"][0])
        vb = vb.at[l * 8 + 5, :D].set(bp["ln2_b"][0])
        vb = vb.at[l * 8 + 6, :MLP_H].set(bp["fc1_b"][0])
        vb = vb.at[l * 8 + 7, :D].set(bp["fc2_b"][0])
    vb = vb.at[DEPTH * 8 + 0, :D].set(params["norm_g"][0])
    vb = vb.at[DEPTH * 8 + 1, :D].set(params["norm_b"][0])
    vb = vb.at[DEPTH * 8 + 2, :NUM_CLASSES].set(params["head_b"][0])
    return wn, ww, vb


@jax.jit
def vpt_vit_forward(x_nchw, params):
    # Shapes are baked into the kernel; fail loudly (at trace time) on mismatch.
    assert x_nchw.shape == (B, C, IMG, IMG), (
        f"kernel is specialised to input shape {(B, C, IMG, IMG)}")
    patches = _patchify(x_nchw).reshape(B * N_PATCH, K_PE)

    # Token-row layout (cls rows first for a dense epilogue):
    #   rows [0, B)                 cls tokens (batch-major)
    #   rows [B, B + B*N_PATCH)     patch tokens (batch-major)
    #   rows [.., R)                prompt tokens (batch-major)
    #   rows [R, RP)                padding rows (self-attending, never read)
    pf = jnp.zeros((RP, K_PE), jnp.float32)
    pf = pf.at[B:B + B * N_PATCH, :].set(patches)
    pf = pf.astype(MM_DTYPE)

    # additive token base: cls+pos[0] | pos[1:]+patch-embed bias | prompts
    # (Shallow VPT: prompt_proj = Identity; prompt_dropout inactive in eval)
    # TODO(synk): prompt_dropout is a no-op here (deterministic / eval forward only).
    cls_base = params["cls_token"][0] + params["pos_embed"][0, 0:1]
    patch_base = params["pos_embed"][0, 1:] + params["pe_b"]
    base = jnp.concatenate(
        [jnp.tile(cls_base, (B, 1)),
         jnp.tile(patch_base, (B, 1)),
         jnp.tile(params["prompt"][0], (B, 1)),
         jnp.zeros((RP - R, D), jnp.float32)], axis=0)              # (RP, D)

    # batch id per row; pad rows get unique ids so they only attend to
    # themselves (stay finite) and are masked out as keys for real rows.
    bid = jnp.concatenate(
        [jnp.arange(B), jnp.repeat(jnp.arange(B), N_PATCH),
         jnp.repeat(jnp.arange(B), PROMPT_NUM),
         jnp.arange(B, B + RP - R)])
    mask = jnp.where(bid[:, None] == bid[None, :], 0.0, -1e30).astype(jnp.float32)

    bm = jnp.zeros((RP, D + S_W), jnp.float32)
    bm = bm.at[:, :D].set(base)
    bm = bm.at[:, D:].set(jnp.tile(mask, (1, NH)))   # same mask in every head block

    wn, ww, vb = _pack_slabs(params)

    vmem = pl.BlockSpec(memory_space=pltpu.MemorySpace.VMEM)
    return pl.pallas_call(
        fused_vit_kernel,
        out_shape=jax.ShapeDtypeStruct((B, NUM_CLASSES), jnp.float32),
        in_specs=[vmem] * 5,
        out_specs=vmem,
    )(pf, bm, wn, ww, vb)


# ------------------------------ parameter init ------------------------------
def init_params(key):
    ks = iter(jax.random.split(key, 8 + DEPTH * 8))
    nrm = lambda k, s: (0.02 * jax.random.normal(k, s)).astype(jnp.float32)

    params = {
        "pe_w": nrm(next(ks), (K_PE, D)),          # flattened conv weight (CPP, D)
        "pe_b": jnp.zeros((1, D), jnp.float32),
        "cls_token": nrm(next(ks), (1, 1, D)),
        "pos_embed": nrm(next(ks), (1, T_TOK, D)),
        "norm_g": jnp.ones((1, D), jnp.float32),
        "norm_b": jnp.zeros((1, D), jnp.float32),
        "head_w": nrm(next(ks), (D, NUM_CLASSES)),
        "head_b": jnp.zeros((1, NUM_CLASSES), jnp.float32),
    }
    # prompt embeddings: uniform(-val, val), val = sqrt(6 / (3*P*P + prompt_dim))
    val = math.sqrt(6.0 / float(3 * P * P + D))
    params["prompt"] = jax.random.uniform(
        next(ks), (1, PROMPT_NUM, D), jnp.float32, minval=-val, maxval=val)

    blocks = []
    for _ in range(DEPTH):
        blocks.append({
            "ln1_g": jnp.ones((1, D), jnp.float32),
            "ln1_b": jnp.zeros((1, D), jnp.float32),
            "qkv_w": nrm(next(ks), (D, 3 * D)),
            "qkv_b": jnp.zeros((1, 3 * D), jnp.float32),
            "proj_w": nrm(next(ks), (D, D)),
            "proj_b": jnp.zeros((1, D), jnp.float32),
            "ln2_g": jnp.ones((1, D), jnp.float32),
            "ln2_b": jnp.zeros((1, D), jnp.float32),
            "fc1_w": nrm(next(ks), (D, MLP_H)),
            "fc1_b": jnp.zeros((1, MLP_H), jnp.float32),
            "fc2_w": nrm(next(ks), (MLP_H, D)),
            "fc2_b": jnp.zeros((1, D), jnp.float32),
        })
    params["blocks"] = blocks
    return params


# ------------------------------ pure-JAX reference ---------------------------
def _ref_forward(x_nchw, params):
    b = x_nchw.shape[0]
    tok = _patchify(x_nchw).reshape(b * N_PATCH, K_PE) @ params["pe_w"] \
        + params["pe_b"][0]
    tok = tok.reshape(b, N_PATCH, D)
    cls = jnp.broadcast_to(params["cls_token"], (b, 1, D))
    x = jnp.concatenate([cls, tok], axis=1) + params["pos_embed"]
    prompts = jnp.broadcast_to(params["prompt"], (b, PROMPT_NUM, D))
    x = jnp.concatenate([x, prompts], axis=1)
    for bp in params["blocks"]:
        h = _layernorm(x, bp["ln1_g"][0], bp["ln1_b"][0])
        qkv = h @ bp["qkv_w"] + bp["qkv_b"][0]
        q, k, v = jnp.split(qkv, 3, axis=-1)
        q = q.reshape(b, T_ALL, NH, HD).transpose(0, 2, 1, 3)
        k = k.reshape(b, T_ALL, NH, HD).transpose(0, 2, 1, 3)
        v = v.reshape(b, T_ALL, NH, HD).transpose(0, 2, 1, 3)
        s = (q * HD ** -0.5) @ k.transpose(0, 1, 3, 2)
        p = jax.nn.softmax(s, axis=-1)
        o = (p @ v).transpose(0, 2, 1, 3).reshape(b, T_ALL, D)
        x = x + o @ bp["proj_w"] + bp["proj_b"][0]
        h2 = _layernorm(x, bp["ln2_g"][0], bp["ln2_b"][0])
        h2 = jax.nn.gelu(h2 @ bp["fc1_w"] + bp["fc1_b"][0], approximate=False)
        x = x + h2 @ bp["fc2_w"] + bp["fc2_b"][0]
    x = x[:, : x.shape[1] - PROMPT_NUM]                            # drop prompts
    cls_t = _layernorm(x[:, 0], params["norm_g"][0], params["norm_b"][0])
    return cls_t @ params["head_w"] + params["head_b"][0]


# ----------------------------------- main ------------------------------------
if __name__ == "__main__":
    key = jax.random.PRNGKey(0)
    k_in, k_par = jax.random.split(key)
    x = jax.random.normal(k_in, (B, C, IMG, IMG), jnp.float32)   # NCHW, like PyTorch
    params = init_params(k_par)

    out = jax.block_until_ready(vpt_vit_forward(x, params))
    ref = jax.block_until_ready(_ref_forward(x, params))

    assert out.shape == (B, NUM_CLASSES)
    # bf16 MXU operands + tanh GELU vs exact f32 reference -> looser tolerance
    assert jnp.allclose(out, ref, atol=2e-2, rtol=2e-2), "mismatch vs reference"
    print("KERNEL_OK")
</pallas_src>

<mosaic_0001>
module attributes {stable_mosaic.version = 11 : i64} {
  func.func @fused_vit_kernel(%arg0: memref<16x192xbf16, #tpu.memory_space<vmem>>, %arg1: memref<16x96xf32, #tpu.memory_space<vmem>>, %arg2: memref<608x32xbf16, #tpu.memory_space<vmem>>, %arg3: memref<128x128xbf16, #tpu.memory_space<vmem>>, %arg4: memref<24x128xf32, #tpu.memory_space<vmem>>, %arg5: memref<2x10xf32, #tpu.memory_space<vmem>>) attributes {dimension_semantics = [], scalar_prefetch = 0 : i64, scratch_operands = 0 : i64, tpu.core_type = #tpu.core_type<tc>} {
    %c0 = arith.constant 0 : index
    %c0_0 = arith.constant 0 : index
    %0 = vector.load %arg1[%c0, %c0_0] : memref<16x96xf32, #tpu.memory_space<vmem>>, vector<16x32xf32>
    %c0_1 = arith.constant 0 : index
    %c32 = arith.constant 32 : index
    %1 = vector.load %arg1[%c0_1, %c32] : memref<16x96xf32, #tpu.memory_space<vmem>>, vector<16x64xf32>
    %c224 = arith.constant 224 : index
    %c0_2 = arith.constant 0 : index
    %2 = vector.load %arg2[%c224, %c0_2] : memref<608x32xbf16, #tpu.memory_space<vmem>>, vector<64x32xbf16>
    %c0_3 = arith.constant 0 : index
    %c0_4 = arith.constant 0 : index
    %3 = vector.load %arg0[%c0_3, %c0_4] : memref<16x192xbf16, #tpu.memory_space<vmem>>, vector<16x192xbf16>
    %c0_5 = arith.constant 0 : index
    %c0_6 = arith.constant 0 : index
    %4 = vector.load %arg2[%c0_5, %c0_6] : memref<608x32xbf16, #tpu.memory_space<vmem>>, vector<192x32xbf16>
    %cst = arith.constant dense<0.000000e+00> : vector<16x32xf32>
    %5 = tpu.matmul %3, %4, %cst {dimension_numbers = #tpu.dot_dimension_numbers<[1], [0], [0], [1], [0, 0, 1, 1], [], []>} : vector<16x192xbf16>, vector<192x32xbf16>, vector<16x32xf32> -> vector<16x32xf32>
    %6 = arith.addf %5, %0 : vector<16x32xf32>
    %c0_7 = arith.constant 0 : index
    %c0_8 = arith.constant 0 : index
    %7 = vector.load %arg4[%c0_7, %c0_8] : memref<24x128xf32, #tpu.memory_space<vmem>>, vector<8x128xf32>
    %8 = vector.extract_strided_slice %7 {offsets = [0, 0], sizes = [1, 32], strides = [1, 1]} : vector<8x128xf32> to vector<1x32xf32>
    %9 = vector.extract_strided_slice %7 {offsets = [1, 0], sizes = [1, 32], strides = [1, 1]} : vector<8x128xf32> to vector<1x32xf32>
    %10 = vector.extract_strided_slice %7 {offsets = [2, 0], sizes = [1, 96], strides = [1, 1]} : vector<8x128xf32> to vector<1x96xf32>
    %11 = vector.extract_strided_slice %7 {offsets = [3, 0], sizes = [1, 32], strides = [1, 1]} : vector<8x128xf32> to vector<1x32xf32>
    %12 = vector.extract_strided_slice %7 {offsets = [4, 0], sizes = [1, 32], strides = [1, 1]} : vector<8x128xf32> to vector<1x32xf32>
    %13 = vector.extract_strided_slice %7 {offsets = [5, 0], sizes = [1, 32], strides = [1, 1]} : vector<8x128xf32> to vector<1x32xf32>
    %14 = vector.extract_strided_slice %7 {offsets = [6, 0], sizes = [1, 128], strides = [1, 1]} : vector<8x128xf32> to vector<1x128xf32>
    %15 = vector.extract_strided_slice %7 {offsets = [7, 0], sizes = [1, 32], strides = [1, 1]} : vector<8x128xf32> to vector<1x32xf32>
    %cst_9 = arith.constant dense<0.000000e+00> : vector<16xf32>
    %16 = vector.multi_reduction <add>, %6, %cst_9 [1] : vector<16x32xf32> to vector<16xf32>
    %17 = vector.shape_cast %16 : vector<16xf32> to vector<16x1xf32>
    %cst_10 = arith.constant 3.200000e+01 : f32
    %18 = vector.broadcast %cst_10 : f32 to vector<16x1xf32>
    %19 = arith.divf %17, %18 : vector<16x1xf32>
    %20 = vector.broadcast %19 : vector<16x1xf32> to vector<16x32xf32>
    %21 = arith.subf %6, %20 : vector<16x32xf32>
    %22 = arith.mulf %21, %21 : vector<16x32xf32>
    %cst_11 = arith.constant dense<0.000000e+00> : vector<16xf32>
    %23 = vector.multi_reduction <add>, %22, %cst_11 [1] : vector<16x32xf32> to vector<16xf32>
    %24 = vector.shape_cast %23 : vector<16xf32> to vector<16x1xf32>
    %cst_12 = arith.constant 3.200000e+01 : f32
    %25 = vector.broadcast %cst_12 : f32 to vector<16x1xf32>
    %26 = arith.divf %24, %25 : vector<16x1xf32>
    %27 = vector.broadcast %19 : vector<16x1xf32> to vector<16x32xf32>
    %28 = arith.subf %6, %27 : vector<16x32xf32>
    %cst_13 = arith.constant 9.99999997E-7 : f32
    %29 = vector.broadcast %cst_13 : f32 to vector<16x1xf32>
    %30 = arith.addf %26, %29 : vector<16x1xf32>
    %31 = math.rsqrt %30 : vector<16x1xf32>
    %32 = vector.broadcast %31 : vector<16x1xf32> to vector<16x32xf32>
    %33 = arith.mulf %28, %32 : vector<16x32xf32>
    %34 = vector.broadcast %8 : vector<1x32xf32> to vector<16x32xf32>
    %35 = arith.mulf %33, %34 : vector<16x32xf32>
    %36 = vector.broadcast %9 : vector<1x32xf32> to vector<16x32xf32>
    %37 = arith.addf %35, %36 : vector<16x32xf32>
    %38 = arith.truncf %37 : vector<16x32xf32> to vector<16x32xbf16>
    %c0_14 = arith.constant 0 : index
    %c0_15 = arith.constant 0 : index
    %39 = vector.load %arg3[%c0_14, %c0_15] : memref<128x128xbf16, #tpu.memory_space<vmem>>, vector<32x96xbf16>
    %cst_16 = arith.constant dense<0.000000e+00> : vector<16x96xf32>
    %40 = tpu.matmul %38, %39, %cst_16 {dimension_numbers = #tpu.dot_dimension_numbers<[1], [0], [0], [1], [0, 0, 1, 1], [], []>} : vector<16x32xbf16>, vector<32x96xbf16>, vector<16x96xf32> -> vector<16x96xf32>
    %41 = vector.broadcast %10 : vector<1x96xf32> to vector<16x96xf32>
    %42 = arith.addf %40, %41 : vector<16x96xf32>
    %43 = arith.truncf %42 : vector<16x96xf32> to vector<16x96xbf16>
    %44 = vector.extract_strided_slice %43 {offsets = [0, 0], sizes = [16, 32], strides = [1, 1]} : vector<16x96xbf16> to vector<16x32xbf16>
    %45 = vector.extract_strided_slice %43 {offsets = [0, 32], sizes = [16, 32], strides = [1, 1]} : vector<16x96xbf16> to vector<16x32xbf16>
    %46 = vector.extract_strided_slice %43 {offsets = [0, 64], sizes = [16, 32], strides = [1, 1]} : vector<16x96xbf16> to vector<16x32xbf16>
    %47 = tpu.concatenate %45, %45, %45, %45 in 0 : vector<16x32xbf16>, vector<16x32xbf16>, vector<16x32xbf16>, vector<16x32xbf16> -> vector<64x32xbf16>
    %48 = arith.mulf %47, %2 : vector<64x32xbf16>
    %49 = tpu.concatenate %46, %46, %46, %46 in 0 : vector<16x32xbf16>, vector<16x32xbf16>, vector<16x32xbf16>, vector<16x32xbf16> -> vector<64x32xbf16>
    %50 = arith.mulf %49, %2 : vector<64x32xbf16>
    %cst_17 = arith.constant dense<0.000000e+00> : vector<16x64xf32>
    %51 = tpu.matmul %44, %48, %cst_17 {dimension_numbers = #tpu.dot_dimension_numbers<[1], [1], [0], [0], [0, 0, 1, 0], [], []>} : vector<16x32xbf16>, vector<64x32xbf16>, vector<16x64xf32> -> vector<16x64xf32>
    %52 = arith.addf %51, %1 : vector<16x64xf32>
    %cst_18 = arith.constant dense<0xFF800000> : vector<16xf32>
    %53 = vector.multi_reduction <maximumf>, %52, %cst_18 [1] : vector<16x64xf32> to vector<16xf32>
    %54 = vector.shape_cast %53 : vector<16xf32> to vector<16x1xf32>
    %55 = vector.broadcast %54 : vector<16x1xf32> to vector<16x64xf32>
    %56 = arith.subf %52, %55 : vector<16x64xf32>
    %57 = math.exp %56 : vector<16x64xf32>
    %58 = arith.truncf %57 : vector<16x64xf32> to vector<16x64xbf16>
    %59 = tpu.concatenate %50, %2 in 1 : vector<64x32xbf16>, vector<64x32xbf16> -> vector<64x64xbf16>
    %cst_19 = arith.constant dense<0.000000e+00> : vector<16x64xf32>
    %60 = tpu.matmul %58, %59, %cst_19 {dimension_numbers = #tpu.dot_dimension_numbers<[1], [0], [0], [1], [0, 0, 1, 1], [], []>} : vector<16x64xbf16>, vector<64x64xbf16>, vector<16x64xf32> -> vector<16x64xf32>
    %61 = vector.extract_strided_slice %60 {offsets = [0, 0], sizes = [16, 32], strides = [1, 1]} : vector<16x64xf32> to vector<16x32xf32>
    %62 = vector.extract_strided_slice %60 {offsets = [0, 32], sizes = [16, 32], strides = [1, 1]} : vector<16x64xf32> to vector<16x32xf32>
    %63 = tpu.reciprocal %62 {approx = true} : vector<16x32xf32> -> vector<16x32xf32>
    %64 = arith.mulf %61, %63 : vector<16x32xf32>
    %65 = arith.truncf %64 : vector<16x32xf32> to vector<16x32xbf16>
    %c288 = arith.constant 288 : index
    %c0_20 = arith.constant 0 : index
    %66 = vector.load %arg2[%c288, %c0_20] : memref<608x32xbf16, #tpu.memory_space<vmem>>, vector<32x32xbf16>
    %cst_21 = arith.constant dense<0.000000e+00> : vector<16x32xf32>
    %67 = tpu.matmul %65, %66, %cst_21 {dimension_numbers = #tpu.dot_dimension_numbers<[1], [0], [0], [1], [0, 0, 1, 1], [], []>} : vector<16x32xbf16>, vector<32x32xbf16>, vector<16x32xf32> -> vector<16x32xf32>
    %68 = arith.addf %6, %67 : vector<16x32xf32>
    %69 = vector.broadcast %11 : vector<1x32xf32> to vector<16x32xf32>
    %70 = arith.addf %68, %69 : vector<16x32xf32>
    %cst_22 = arith.constant dense<0.000000e+00> : vector<16xf32>
    %71 = vector.multi_reduction <add>, %70, %cst_22 [1] : vector<16x32xf32> to vector<16xf32>
    %72 = vector.shape_cast %71 : vector<16xf32> to vector<16x1xf32>
    %cst_23 = arith.constant 3.200000e+01 : f32
    %73 = vector.broadcast %cst_23 : f32 to vector<16x1xf32>
    %74 = arith.divf %72, %73 : vector<16x1xf32>
    %75 = vector.broadcast %74 : vector<16x1xf32> to vector<16x32xf32>
    %76 = arith.subf %70, %75 : vector<16x32xf32>
    %77 = arith.mulf %76, %76 : vector<16x32xf32>
    %cst_24 = arith.constant dense<0.000000e+00> : vector<16xf32>
    %78 = vector.multi_reduction <add>, %77, %cst_24 [1] : vector<16x32xf32> to vector<16xf32>
    %79 = vector.shape_cast %78 : vector<16xf32> to vector<16x1xf32>
    %cst_25 = arith.constant 3.200000e+01 : f32
    %80 = vector.broadcast %cst_25 : f32 to vector<16x1xf32>
    %81 = arith.divf %79, %80 : vector<16x1xf32>
    %82 = vector.broadcast %74 : vector<16x1xf32> to vector<16x32xf32>
    %83 = arith.subf %70, %82 : vector<16x32xf32>
    %cst_26 = arith.constant 9.99999997E-7 : f32
    %84 = vector.broadcast %cst_26 : f32 to vector<16x1xf32>
    %85 = arith.addf %81, %84 : vector<16x1xf32>
    %86 = math.rsqrt %85 : vector<16x1xf32>
    %87 = vector.broadcast %86 : vector<16x1xf32> to vector<16x32xf32>
    %88 = arith.mulf %83, %87 : vector<16x32xf32>
    %89 = vector.broadcast %12 : vector<1x32xf32> to vector<16x32xf32>
    %90 = arith.mulf %88, %89 : vector<16x32xf32>
    %91 = vector.broadcast %13 : vector<1x32xf32> to vector<16x32xf32>
    %92 = arith.addf %90, %91 : vector<16x32xf32>
    %93 = arith.truncf %92 : vector<16x32xf32> to vector<16x32xbf16>
    %c32_27 = arith.constant 32 : index
    %c0_28 = arith.constant 0 : index
    %94 = vector.load %arg3[%c32_27, %c0_28] : memref<128x128xbf16, #tpu.memory_space<vmem>>, vector<32x128xbf16>
    %cst_29 = arith.constant dense<0.000000e+00> : vector<16x128xf32>
    %95 = tpu.matmul %93, %94, %cst_29 {dimension_numbers = #tpu.dot_dimension_numbers<[1], [0], [0], [1], [0, 0, 1, 1], [], []>} : vector<16x32xbf16>, vector<32x128xbf16>, vector<16x128xf32> -> vector<16x128xf32>
    %96 = vector.broadcast %14 : vector<1x128xf32> to vector<16x128xf32>
    %97 = arith.addf %95, %96 : vector<16x128xf32>
    %98 = arith.mulf %97, %97 : vector<16x128xf32>
    %99 = arith.mulf %97, %98 : vector<16x128xf32>
    %cst_30 = arith.constant 4.471500e-02 : f32
    %100 = vector.broadcast %cst_30 : f32 to vector<16x128xf32>
    %101 = arith.mulf %100, %99 : vector<16x128xf32>
    %102 = arith.addf %97, %101 : vector<16x128xf32>
    %cst_31 = arith.constant 0.797884583 : f32
    %103 = vector.broadcast %cst_31 : f32 to vector<16x128xf32>
    %104 = arith.mulf %103, %102 : vector<16x128xf32>
    %105 = math.tanh %104 : vector<16x128xf32>
    %cst_32 = arith.constant 1.000000e+00 : f32
    %106 = vector.broadcast %cst_32 : f32 to vector<16x128xf32>
    %107 = arith.addf %106, %105 : vector<16x128xf32>
    %cst_33 = arith.constant 5.000000e-01 : f32
    %108 = vector.broadcast %cst_33 : f32 to vector<16x128xf32>
    %109 = arith.mulf %108, %107 : vector<16x128xf32>
    %110 = arith.mulf %97, %109 : vector<16x128xf32>
    %111 = arith.truncf %110 : vector<16x128xf32> to vector<16x128xbf16>
    %c352 = arith.constant 352 : index
    %c0_34 = arith.constant 0 : index
    %112 = vector.load %arg2[%c352, %c0_34] : memref<608x32xbf16, #tpu.memory_space<vmem>>, vector<128x32xbf16>
    %cst_35 = arith.constant dense<0.000000e+00> : vector<16x32xf32>
    %113 = tpu.matmul %111, %112, %cst_35 {dimension_numbers = #tpu.dot_dimension_numbers<[1], [0], [0], [1], [0, 0, 1, 1], [], []>} : vector<16x128xbf16>, vector<128x32xbf16>, vector<16x32xf32> -> vector<16x32xf32>
    %114 = arith.addf %70, %113 : vector<16x32xf32>
    %115 = vector.broadcast %15 : vector<1x32xf32> to vector<16x32xf32>
    %116 = arith.addf %114, %115 : vector<16x32xf32>
    %c8 = arith.constant 8 : index
    %c0_36 = arith.constant 0 : index
    %117 = vector.load %arg4[%c8, %c0_36] : memref<24x128xf32, #tpu.memory_space<vmem>>, vector<8x128xf32>
    %118 = vector.extract_strided_slice %117 {offsets = [0, 0], sizes = [1, 32], strides = [1, 1]} : vector<8x128xf32> to vector<1x32xf32>
    %119 = vector.extract_strided_slice %117 {offsets = [1, 0], sizes = [1, 32], strides = [1, 1]} : vector<8x128xf32> to vector<1x32xf32>
    %120 = vector.extract_strided_slice %117 {offsets = [2, 0], sizes = [1, 96], strides = [1, 1]} : vector<8x128xf32> to vector<1x96xf32>
    %121 = vector.extract_strided_slice %117 {offsets = [3, 0], sizes = [1, 32], strides = [1, 1]} : vector<8x128xf32> to vector<1x32xf32>
    %122 = vector.extract_strided_slice %117 {offsets = [4, 0], sizes = [1, 32], strides = [1, 1]} : vector<8x128xf32> to vector<1x32xf32>
    %123 = vector.extract_strided_slice %117 {offsets = [5, 0], sizes = [1, 32], strides = [1, 1]} : vector<8x128xf32> to vector<1x32xf32>
    %124 = vector.extract_strided_slice %117 {offsets = [6, 0], sizes = [1, 128], strides = [1, 1]} : vector<8x128xf32> to vector<1x128xf32>
    %125 = vector.extract_strided_slice %117 {offsets = [7, 0], sizes = [1, 32], strides = [1, 1]} : vector<8x128xf32> to vector<1x32xf32>
    %cst_37 = arith.constant dense<0.000000e+00> : vector<16xf32>
    %126 = vector.multi_reduction <add>, %116, %cst_37 [1] : vector<16x32xf32> to vector<16xf32>
    %127 = vector.shape_cast %126 : vector<16xf32> to vector<16x1xf32>
    %cst_38 = arith.constant 3.200000e+01 : f32
    %128 = vector.broadcast %cst_38 : f32 to vector<16x1xf32>
    %129 = arith.divf %127, %128 : vector<16x1xf32>
    %130 = vector.broadcast %129 : vector<16x1xf32> to vector<16x32xf32>
    %131 = arith.subf %116, %130 : vector<16x32xf32>
    %132 = arith.mulf %131, %131 : vector<16x32xf32>
    %cst_39 = arith.constant dense<0.000000e+00> : vector<16xf32>
    %133 = vector.multi_reduction <add>, %132, %cst_39 [1] : vector<16x32xf32> to vector<16xf32>
    %134 = vector.shape_cast %133 : vector<16xf32> to vector<16x1xf32>
    %cst_40 = arith.constant 3.200000e+01 : f32
    %135 = vector.broadcast %cst_40 : f32 to vector<16x1xf32>
    %136 = arith.divf %134, %135 : vector<16x1xf32>
    %137 = vector.broadcast %129 : vector<16x1xf32> to vector<16x32xf32>
    %138 = arith.subf %116, %137 : vector<16x32xf32>
    %cst_41 = arith.constant 9.99999997E-7 : f32
    %139 = vector.broadcast %cst_41 : f32 to vector<16x1xf32>
    %140 = arith.addf %136, %139 : vector<16x1xf32>
    %141 = math.rsqrt %140 : vector<16x1xf32>
    %142 = vector.broadcast %141 : vector<16x1xf32> to vector<16x32xf32>
    %143 = arith.mulf %138, %142 : vector<16x32xf32>
    %144 = vector.broadcast %118 : vector<1x32xf32> to vector<16x32xf32>
    %145 = arith.mulf %143, %144 : vector<16x32xf32>
    %146 = vector.broadcast %119 : vector<1x32xf32> to vector<16x32xf32>
    %147 = arith.addf %145, %146 : vector<16x32xf32>
    %148 = arith.truncf %147 : vector<16x32xf32> to vector<16x32xbf16>
    %c64 = arith.constant 64 : index
    %c0_42 = arith.constant 0 : index
    %149 = vector.load %arg3[%c64, %c0_42] : memref<128x128xbf16, #tpu.memory_space<vmem>>, vector<32x96xbf16>
    %cst_43 = arith.constant dense<0.000000e+00> : vector<16x96xf32>
    %150 = tpu.matmul %148, %149, %cst_43 {dimension_numbers = #tpu.dot_dimension_numbers<[1], [0], [0], [1], [0, 0, 1, 1], [], []>} : vector<16x32xbf16>, vector<32x96xbf16>, vector<16x96xf32> -> vector<16x96xf32>
    %151 = vector.broadcast %120 : vector<1x96xf32> to vector<16x96xf32>
    %152 = arith.addf %150, %151 : vector<16x96xf32>
    %153 = arith.truncf %152 : vector<16x96xf32> to vector<16x96xbf16>
    %154 = vector.extract_strided_slice %153 {offsets = [0, 0], sizes = [16, 32], strides = [1, 1]} : vector<16x96xbf16> to vector<16x32xbf16>
    %155 = vector.extract_strided_slice %153 {offsets = [0, 32], sizes = [16, 32], strides = [1, 1]} : vector<16x96xbf16> to vector<16x32xbf16>
    %156 = vector.extract_strided_slice %153 {offsets = [0, 64], sizes = [16, 32], strides = [1, 1]} : vector<16x96xbf16> to vector<16x32xbf16>
    %157 = tpu.concatenate %155, %155, %155, %155 in 0 : vector<16x32xbf16>, vector<16x32xbf16>, vector<16x32xbf16>, vector<16x32xbf16> -> vector<64x32xbf16>
    %158 = arith.mulf %157, %2 : vector<64x32xbf16>
    %159 = tpu.concatenate %156, %156, %156, %156 in 0 : vector<16x32xbf16>, vector<16x32xbf16>, vector<16x32xbf16>, vector<16x32xbf16> -> vector<64x32xbf16>
    %160 = arith.mulf %159, %2 : vector<64x32xbf16>
    %cst_44 = arith.constant dense<0.000000e+00> : vector<16x64xf32>
    %161 = tpu.matmul %154, %158, %cst_44 {dimension_numbers = #tpu.dot_dimension_numbers<[1], [1], [0], [0], [0, 0, 1, 0], [], []>} : vector<16x32xbf16>, vector<64x32xbf16>, vector<16x64xf32> -> vector<16x64xf32>
    %162 = arith.addf %161, %1 : vector<16x64xf32>
    %cst_45 = arith.constant dense<0xFF800000> : vector<16xf32>
    %163 = vector.multi_reduction <maximumf>, %162, %cst_45 [1] : vector<16x64xf32> to vector<16xf32>
    %164 = vector.shape_cast %163 : vector<16xf32> to vector<16x1xf32>
    %165 = vector.broadcast %164 : vector<16x1xf32> to vector<16x64xf32>
    %166 = arith.subf %162, %165 : vector<16x64xf32>
    %167 = math.exp %166 : vector<16x64xf32>
    %168 = arith.truncf %167 : vector<16x64xf32> to vector<16x64xbf16>
    %169 = tpu.concatenate %160, %2 in 1 : vector<64x32xbf16>, vector<64x32xbf16> -> vector<64x64xbf16>
    %cst_46 = arith.constant dense<0.000000e+00> : vector<16x64xf32>
    %170 = tpu.matmul %168, %169, %cst_46 {dimension_numbers = #tpu.dot_dimension_numbers<[1], [0], [0], [1], [0, 0, 1, 1], [], []>} : vector<16x64xbf16>, vector<64x64xbf16>, vector<16x64xf32> -> vector<16x64xf32>
    %171 = vector.extract_strided_slice %170 {offsets = [0, 0], sizes = [16, 32], strides = [1, 1]} : vector<16x64xf32> to vector<16x32xf32>
    %172 = vector.extract_strided_slice %170 {offsets = [0, 32], sizes = [16, 32], strides = [1, 1]} : vector<16x64xf32> to vector<16x32xf32>
    %173 = tpu.reciprocal %172 {approx = true} : vector<16x32xf32> -> vector<16x32xf32>
    %174 = arith.mulf %171, %173 : vector<16x32xf32>
    %175 = arith.truncf %174 : vector<16x32xf32> to vector<16x32xbf16>
    %c320 = arith.constant 320 : index
    %c0_47 = arith.constant 0 : index
    %176 = vector.load %arg2[%c320, %c0_47] : memref<608x32xbf16, #tpu.memory_space<vmem>>, vector<32x32xbf16>
    %cst_48 = arith.constant dense<0.000000e+00> : vector<16x32xf32>
    %177 = tpu.matmul %175, %176, %cst_48 {dimension_numbers = #tpu.dot_dimension_numbers<[1], [0], [0], [1], [0, 0, 1, 1], [], []>} : vector<16x32xbf16>, vector<32x32xbf16>, vector<16x32xf32> -> vector<16x32xf32>
    %178 = arith.addf %116, %177 : vector<16x32xf32>
    %179 = vector.broadcast %121 : vector<1x32xf32> to vector<16x32xf32>
    %180 = arith.addf %178, %179 : vector<16x32xf32>
    %cst_49 = arith.constant dense<0.000000e+00> : vector<16xf32>
    %181 = vector.multi_reduction <add>, %180, %cst_49 [1] : vector<16x32xf32> to vector<16xf32>
    %182 = vector.shape_cast %181 : vector<16xf32> to vector<16x1xf32>
    %cst_50 = arith.constant 3.200000e+01 : f32
    %183 = vector.broadcast %cst_50 : f32 to vector<16x1xf32>
    %184 = arith.divf %182, %183 : vector<16x1xf32>
    %185 = vector.broadcast %184 : vector<16x1xf32> to vector<16x32xf32>
    %186 = arith.subf %180, %185 : vector<16x32xf32>
    %187 = arith.mulf %186, %186 : vector<16x32xf32>
    %cst_51 = arith.constant dense<0.000000e+00> : vector<16xf32>
    %188 = vector.multi_reduction <add>, %187, %cst_51 [1] : vector<16x32xf32> to vector<16xf32>
    %189 = vector.shape_cast %188 : vector<16xf32> to vector<16x1xf32>
    %cst_52 = arith.constant 3.200000e+01 : f32
    %190 = vector.broadcast %cst_52 : f32 to vector<16x1xf32>
    %191 = arith.divf %189, %190 : vector<16x1xf32>
    %192 = vector.broadcast %184 : vector<16x1xf32> to vector<16x32xf32>
    %193 = arith.subf %180, %192 : vector<16x32xf32>
    %cst_53 = arith.constant 9.99999997E-7 : f32
    %194 = vector.broadcast %cst_53 : f32 to vector<16x1xf32>
    %195 = arith.addf %191, %194 : vector<16x1xf32>
    %196 = math.rsqrt %195 : vector<16x1xf32>
    %197 = vector.broadcast %196 : vector<16x1xf32> to vector<16x32xf32>
    %198 = arith.mulf %193, %197 : vector<16x32xf32>
    %199 = vector.broadcast %122 : vector<1x32xf32> to vector<16x32xf32>
    %200 = arith.mulf %198, %199 : vector<16x32xf32>
    %201 = vector.broadcast %123 : vector<1x32xf32> to vector<16x32xf32>
    %202 = arith.addf %200, %201 : vector<16x32xf32>
    %203 = arith.truncf %202 : vector<16x32xf32> to vector<16x32xbf16>
    %c96 = arith.constant 96 : index
    %c0_54 = arith.constant 0 : index
    %204 = vector.load %arg3[%c96, %c0_54] : memref<128x128xbf16, #tpu.memory_space<vmem>>, vector<32x128xbf16>
    %cst_55 = arith.constant dense<0.000000e+00> : vector<16x128xf32>
    %205 = tpu.matmul %203, %204, %cst_55 {dimension_numbers = #tpu.dot_dimension_numbers<[1], [0], [0], [1], [0, 0, 1, 1], [], []>} : vector<16x32xbf16>, vector<32x128xbf16>, vector<16x128xf32> -> vector<16x128xf32>
    %206 = vector.broadcast %124 : vector<1x128xf32> to vector<16x128xf32>
    %207 = arith.addf %205, %206 : vector<16x128xf32>
    %208 = arith.mulf %207, %207 : vector<16x128xf32>
    %209 = arith.mulf %207, %208 : vector<16x128xf32>
    %cst_56 = arith.constant 4.471500e-02 : f32
    %210 = vector.broadcast %cst_56 : f32 to vector<16x128xf32>
    %211 = arith.mulf %210, %209 : vector<16x128xf32>
    %212 = arith.addf %207, %211 : vector<16x128xf32>
    %cst_57 = arith.constant 0.797884583 : f32
    %213 = vector.broadcast %cst_57 : f32 to vector<16x128xf32>
    %214 = arith.mulf %213, %212 : vector<16x128xf32>
    %215 = math.tanh %214 : vector<16x128xf32>
    %cst_58 = arith.constant 1.000000e+00 : f32
    %216 = vector.broadcast %cst_58 : f32 to vector<16x128xf32>
    %217 = arith.addf %216, %215 : vector<16x128xf32>
    %cst_59 = arith.constant 5.000000e-01 : f32
    %218 = vector.broadcast %cst_59 : f32 to vector<16x128xf32>
    %219 = arith.mulf %218, %217 : vector<16x128xf32>
    %220 = arith.mulf %207, %219 : vector<16x128xf32>
    %221 = arith.truncf %220 : vector<16x128xf32> to vector<16x128xbf16>
    %c480 = arith.constant 480 : index
    %c0_60 = arith.constant 0 : index
    %222 = vector.load %arg2[%c480, %c0_60] : memref<608x32xbf16, #tpu.memory_space<vmem>>, vector<128x32xbf16>
    %cst_61 = arith.constant dense<0.000000e+00> : vector<16x32xf32>
    %223 = tpu.matmul %221, %222, %cst_61 {dimension_numbers = #tpu.dot_dimension_numbers<[1], [0], [0], [1], [0, 0, 1, 1], [], []>} : vector<16x128xbf16>, vector<128x32xbf16>, vector<16x32xf32> -> vector<16x32xf32>
    %224 = arith.addf %180, %223 : vector<16x32xf32>
    %225 = vector.broadcast %125 : vector<1x32xf32> to vector<16x32xf32>
    %226 = arith.addf %224, %225 : vector<16x32xf32>
    %c16 = arith.constant 16 : index
    %c0_62 = arith.constant 0 : index
    %227 = vector.load %arg4[%c16, %c0_62] : memref<24x128xf32, #tpu.memory_space<vmem>>, vector<1x32xf32>
    %c17 = arith.constant 17 : index
    %c0_63 = arith.constant 0 : index
    %228 = vector.load %arg4[%c17, %c0_63] : memref<24x128xf32, #tpu.memory_space<vmem>>, vector<1x32xf32>
    %c18 = arith.constant 18 : index
    %c0_64 = arith.constant 0 : index
    %229 = vector.load %arg4[%c18, %c0_64] : memref<24x128xf32, #tpu.memory_space<vmem>>, vector<1x10xf32>
    %230 = vector.extract_strided_slice %226 {offsets = [0, 0], sizes = [2, 32], strides = [1, 1]} : vector<16x32xf32> to vector<2x32xf32>
    %cst_65 = arith.constant dense<0.000000e+00> : vector<2xf32>
    %231 = vector.multi_reduction <add>, %230, %cst_65 [1] : vector<2x32xf32> to vector<2xf32>
    %232 = vector.shape_cast %231 : vector<2xf32> to vector<2x1xf32>
    %cst_66 = arith.constant 3.200000e+01 : f32
    %233 = vector.broadcast %cst_66 : f32 to vector<2x1xf32>
    %234 = arith.divf %232, %233 : vector<2x1xf32>
    %235 = vector.broadcast %234 : vector<2x1xf32> to vector<2x32xf32>
    %236 = arith.subf %230, %235 : vector<2x32xf32>
    %237 = arith.mulf %236, %236 : vector<2x32xf32>
    %cst_67 = arith.constant dense<0.000000e+00> : vector<2xf32>
    %238 = vector.multi_reduction <add>, %237, %cst_67 [1] : vector<2x32xf32> to vector<2xf32>
    %239 = vector.shape_cast %238 : vector<2xf32> to vector<2x1xf32>
    %cst_68 = arith.constant 3.200000e+01 : f32
    %240 = vector.broadcast %cst_68 : f32 to vector<2x1xf32>
    %241 = arith.divf %239, %240 : vector<2x1xf32>
    %242 = vector.broadcast %234 : vector<2x1xf32> to vector<2x32xf32>
    %243 = arith.subf %230, %242 : vector<2x32xf32>
    %cst_69 = arith.constant 9.99999997E-7 : f32
    %244 = vector.broadcast %cst_69 : f32 to vector<2x1xf32>
    %245 = arith.addf %241, %244 : vector<2x1xf32>
    %246 = math.rsqrt %245 : vector<2x1xf32>
    %247 = vector.broadcast %246 : vector<2x1xf32> to vector<2x32xf32>
    %248 = arith.mulf %243, %247 : vector<2x32xf32>
    %249 = vector.broadcast %227 : vector<1x32xf32> to vector<2x32xf32>
    %250 = arith.mulf %248, %249 : vector<2x32xf32>
    %251 = vector.broadcast %228 : vector<1x32xf32> to vector<2x32xf32>
    %252 = arith.addf %250, %251 : vector<2x32xf32>
    %253 = arith.truncf %252 : vector<2x32xf32> to vector<2x32xbf16>
    %c192 = arith.constant 192 : index
    %c0_70 = arith.constant 0 : index
    %254 = vector.load %arg2[%c192, %c0_70] : memref<608x32xbf16, #tpu.memory_space<vmem>>, vector<32x10xbf16>
    %cst_71 = arith.constant dense<0.000000e+00> : vector<2x10xf32>
    %255 = tpu.matmul %253, %254, %cst_71 {dimension_numbers = #tpu.dot_dimension_numbers<[1], [0], [0], [1], [0, 0, 1, 1], [], []>} : vector<2x32xbf16>, vector<32x10xbf16>, vector<2x10xf32> -> vector<2x10xf32>
    %256 = vector.broadcast %229 : vector<1x10xf32> to vector<2x10xf32>
    %257 = arith.addf %255, %256 : vector<2x10xf32>
    %c0_72 = arith.constant 0 : index
    %c0_73 = arith.constant 0 : index
    %258 = vector.load %arg5[%c0_72, %c0_73] : memref<2x10xf32, #tpu.memory_space<vmem>>, vector<2x10xf32>
    tpu.vector_store %arg5[%c0_72, %c0_73], %257 {strides = array<i32>} : memref<2x10xf32, #tpu.memory_space<vmem>>, vector<2x10xf32>,
    return
  }
}

</mosaic_0001>

<llo_original>
// kernel: vpt_vit_forward.1
$region0: #{vpt_vit_forward.1}
  #allocation0 [shape = 'u32[]', space=smem, size = 0x4, offset = 0x4, fixed_abs, tag = 'smem constant byte address 0x4 - core index']
  #allocation1 [shape = 'u32[144,128]{1,0:T(1,128)}', space=vmem, size = 0x12000, scoped, tag = 'internal scratch']
  %s0 = inlined_call_operand.vmem [shape: bf16[16,192], index: 0, kind: input, shape index: {}]
  %s1 = inlined_call_operand.vmem [shape: f32[16,96], index: 1, kind: input, shape index: {}]
  %s2 = inlined_call_operand.vmem [shape: bf16[608,32], index: 2, kind: input, shape index: {}]
  %s3 = inlined_call_operand.vmem [shape: bf16[128,128], index: 3, kind: input, shape index: {}]
  %s4 = inlined_call_operand.vmem [shape: f32[24,128], index: 4, kind: input, shape index: {}]
  %s5 = inlined_call_operand.hbm [shape: f32[2,10], index: 5, kind: output, shape index: {}]
  %s6 = sld [smem:[#allocation0]]
  $region30: #{vpt_vit_forward.1} parent=0
    _
  %s8 = ssub.s32 1, %s6
  %s9 = scalar_select 0, %s8, %s6
  $region1: #{vpt_vit_forward.1} parent=0
    #allocation2 [shape = 'u8[1024]{0}', space=vmem, size = 0x400, scoped, tag = 'output window, operand 0, single buffered']
    #allocation3 [shape = 's32[1]{0}', space=sflag, size = 0x4, scoped, tag = 'scoped memory for vpt_vit_forward.1']
    %10 = vsyncpa [#allocation3], 0
    // Predicated region
    $region2: #{vpt_vit_forward.1} parent=1 // pred_check
      _
    $region3: #{vpt_vit_forward.1} parent=1 // pred_check_branch
      %12 = sbr.rel (0) target = $region5
    $region4: #{vpt_vit_forward.1} parent=1 // pred_region
      _
    $region5: #{vpt_vit_forward.1} parent=1 // pred_fallthru
      _
    // Predicated region
    $region6: #{vpt_vit_forward.1} parent=1 // pred_check
      _
    $region7: #{vpt_vit_forward.1} parent=1 // pred_check_branch
      %14 = sbr.rel (0) target = $region9
    $region8: #{vpt_vit_forward.1} parent=1 // pred_region
      _
    $region9: #{vpt_vit_forward.1} parent=1 // pred_fallthru
      _
    // Predicated region
    $region10: #{vpt_vit_forward.1} parent=1 // pred_check
      _
    $region11: #{vpt_vit_forward.1} parent=1 // pred_check_branch
      %16 = sbr.rel (0) target = $region13
    $region12: #{vpt_vit_forward.1} parent=1 // pred_region
      _
    $region13: #{vpt_vit_forward.1} parent=1 // pred_fallthru
      _
    // Predicated region
    $region14: #{vpt_vit_forward.1} parent=1 // pred_check
      _
    $region15: #{vpt_vit_forward.1} parent=1 // pred_check_branch
      %18 = sbr.rel (0) target = $region17
    $region16: #{vpt_vit_forward.1} parent=1 // pred_region
      _
    $region17: #{vpt_vit_forward.1} parent=1 // pred_fallthru
      _
    // Predicated region
    $region18: #{vpt_vit_forward.1} parent=1 // pred_check
      _
    $region19: #{vpt_vit_forward.1} parent=1 // pred_check_branch
      %20 = sbr.rel (0) target = $region21
    $region20: #{vpt_vit_forward.1} parent=1 // pred_region
      _
    $region21: #{vpt_vit_forward.1} parent=1 // pred_fallthru
      _
    %v22 = vld [vmem:[%s1] sm:$0xff]
    %v23 = vld [vmem:[%s1 + $0x8] sm:$0xff]
    %v24 = vld [vmem:[%s2 + $0x70] sm:$0xf]
    %v25 = vld [vmem:[%s2 + $0x74] sm:$0xf]
    %v26 = vld [vmem:[%s2 + $0x78] sm:$0xf]
    %v27 = vld [vmem:[%s2 + $0x7c] sm:$0xf]
    %v28 = vld [vmem:[%s2 + $0x80] sm:$0xf]
    %v29 = vld [vmem:[%s2 + $0x84] sm:$0xf]
    %v30 = vld [vmem:[%s2 + $0x88] sm:$0xf]
    %v31 = vld [vmem:[%s2 + $0x8c] sm:$0xf]
    %v32 = vld [vmem:[%s0] sm:$0xff]
    %v33 = vld [vmem:[%s0 + $0x8] sm:$0xff]
    %v34 = vld [vmem:[%s2] sm:$0xf]
    %v35 = vld [vmem:[%s2 + $0x4] sm:$0xf]
    %v36 = vld [vmem:[%s2 + $0x8] sm:$0xf]
    %v37 = vld [vmem:[%s2 + $0xc] sm:$0xf]
    %v38 = vld [vmem:[%s2 + $0x10] sm:$0xf]
    %v39 = vld [vmem:[%s2 + $0x14] sm:$0xf]
    %v40 = vld [vmem:[%s2 + $0x18] sm:$0xf]
    %v41 = vld [vmem:[%s2 + $0x1c] sm:$0xf]
    %v42 = vld [vmem:[%s2 + $0x20] sm:$0xf]
    %v43 = vld [vmem:[%s2 + $0x24] sm:$0xf]
    %v44 = vld [vmem:[%s2 + $0x28] sm:$0xf]
    %v45 = vld [vmem:[%s2 + $0x2c] sm:$0xf]
    %v46 = vld [vmem:[%s2 + $0x30] sm:$0xf]
    %v47 = vld [vmem:[%s2 + $0x34] sm:$0xf]
    %v48 = vld [vmem:[%s2 + $0x38] sm:$0xf]
    %v49 = vld [vmem:[%s2 + $0x3c] sm:$0xf]
    %v50 = vld [vmem:[%s2 + $0x40] sm:$0xf]
    %v51 = vld [vmem:[%s2 + $0x44] sm:$0xf]
    %v52 = vld [vmem:[%s2 + $0x48] sm:$0xf]
    %v53 = vld [vmem:[%s2 + $0x4c] sm:$0xf]
    %v54 = vld [vmem:[%s2 + $0x50] sm:$0xf]
    %v55 = vld [vmem:[%s2 + $0x54] sm:$0xf]
    %v56 = vld [vmem:[%s2 + $0x58] sm:$0xf]
    %v57 = vld [vmem:[%s2 + $0x5c] sm:$0xf]
    %v60 = vunpack.c.l.b16 %v32
    %v61 = vunpack.c.h.b16 %v32
    %v62 = vunpack.c.l.b16 %v33
    %v63 = vunpack.c.h.b16 %v33
    %v64 = vpack.c.b16 %v62, %v60
    %v65 = vpack.c.b16 %v63, %v61
    %v91 = vunpack.c.l.b16 %v34
    %v92 = vunpack.c.l.b16 %v35
    %v93 = vunpack.c.l.b16 %v36
    %v94 = vunpack.c.l.b16 %v37
    %v95 = vunpack.c.l.b16 %v38
    %v96 = vunpack.c.l.b16 %v39
    %v97 = vunpack.c.l.b16 %v40
    %v98 = vunpack.c.l.b16 %v41
    %v99 = vunpack.c.l.b16 %v42
    %v100 = vunpack.c.l.b16 %v43
    %v101 = vunpack.c.l.b16 %v44
    %v102 = vunpack.c.l.b16 %v45
    %v103 = vunpack.c.l.b16 %v46
    %v104 = vunpack.c.l.b16 %v47
    %v105 = vunpack.c.l.b16 %v48
    %v106 = vunpack.c.l.b16 %v49
    %v107 = vunpack.c.l.b16 %v50
    %v108 = vunpack.c.l.b16 %v51
    %v109 = vunpack.c.l.b16 %v52
    %v110 = vunpack.c.l.b16 %v53
    %v111 = vunpack.c.l.b16 %v54
    %v112 = vunpack.c.l.b16 %v55
    %v113 = vunpack.c.l.b16 %v56
    %v114 = vunpack.c.l.b16 %v57
    %v115 = vpack.c.b16 %v92, %v91
    %v116 = vpack.c.b16 %v94, %v93
    %v117 = vpack.c.b16 %v96, %v95
    %v118 = vpack.c.b16 %v98, %v97
    %v119 = vpack.c.b16 %v100, %v99
    %v120 = vpack.c.b16 %v102, %v101
    %v121 = vpack.c.b16 %v104, %v103
    %v122 = vpack.c.b16 %v106, %v105
    %v123 = vpack.c.b16 %v108, %v107
    %v124 = vpack.c.b16 %v110, %v109
    %v125 = vpack.c.b16 %v112, %v111
    %v126 = vpack.c.b16 %v114, %v113
    %vm139 = vcmask 523264
    %v141 = vsel %vm139, %v65, 0
    %143 = vmatprep.subr.bf16.mxu0 0
    %144 = vmatpush1.bf16.msra.mxu0 %v115
    %145 = vmatprep.subr.bf16.mxu0 0
    %146 = vmatpush1.bf16.msra.mxu0 %v116
    %147 = vmatprep.subr.bf16.mxu0 0
    %148 = vmatpush1.bf16.msra.mxu0 %v117
    %149 = vmatprep.subr.bf16.mxu0 0
    %150 = vmatpush1.bf16.msra.mxu0 %v118
    %151 = vmatprep.subr.bf16.mxu0 0
    %152 = vmatpush1.bf16.msra.mxu0 %v119
    %153 = vmatprep.subr.bf16.mxu0 0
    %154 = vmatpush1.bf16.msra.mxu0 %v120
    %155 = vmatprep.subr.bf16.mxu0 0
    %156 = vmatpush1.bf16.msra.mxu0 %v121
    %157 = vmatprep.subr.bf16.mxu0 0
    %158 = vmatpush1.bf16.msra.mxu0 %v122
    %159 = vmatprep.subr.bf16.mxu0 0
    %160 = vmatpush1.bf16.msra.mxu0 %v123
    %161 = vmatprep.subr.bf16.mxu0 0
    %162 = vmatpush1.bf16.msra.mxu0 %v124
    %163 = vmatprep.subr.bf16.mxu0 0
    %164 = vmatpush1.bf16.msra.mxu0 %v125
    %165 = vmatprep.subr.bf16.mxu0 0
    %166 = vmatpush1.bf16.msra.mxu0 %v126
    %167 = vmatprep.subr.bf16.mxu0 0
    %168 = vmatpush1.bf16.msra.mxu0 0
    %169 = vmatprep.subr.bf16.mxu0 0
    %170 = vmatpush1.bf16.msra.mxu0 0
    %171 = vmatprep.subr.bf16.mxu0 0
    %172 = vmatpush1.bf16.msra.mxu0 0
    %173 = vmatprep.subr.bf16.mxu0 0
    %174 = vmatpush1.bf16.msra.mxu0 0
    %175 = vmatprep.mubr.bf16.mxu0 %v141
    %176 = vmatmul.mubr.bf16.gmra.mrb[0].mxu0 %v64
    %v177 = vpop.f32.mrb[0].mxu0
    %v178 = vadd.f32 %v22, %v177
    %v179 = vpop.f32.mrb[0].mxu0
    %v180 = vpop.f32.mrb[0].mxu0
    %v181 = vadd.f32 %v23, %v180
    %v182 = vpop.f32.mrb[0].mxu0
    %183 = vdwg.mxu0
    %v184 = vld [vmem:[%s4] sm:$0xff]
    %vm185 = vcmask 261120
    %v186 = vsel %vm185, %v178, 0.0
    %187 = vadd.xlane.f32.xlu0 %v186
    %v188 = vpop.xlane.xlu0 %187
    %v189 = vsel %vm185, %v181, 0.0
    %190 = vadd.xlane.f32.xlu0 %v189
    %v191 = vpop.xlane.xlu0 %190
    %v192 = vrcp.pop 32.0
    %v193 = vmul.f32 %v188, %v192
    %v194 = vmul.f32 %v191, %v192
    %v195 = vsub.f32 %v178, %v193
    %v196 = vsub.f32 %v181, %v194
    %v197 = vmul.f32 %v195, %v195
    %v198 = vmul.f32 %v196, %v196
    %v199 = vsel %vm185, %v197, 0.0
    %200 = vadd.xlane.f32.xlu0 %v199
    %v201 = vpop.xlane.xlu0 %200
    %v202 = vsel %vm185, %v198, 0.0
    %203 = vadd.xlane.f32.xlu0 %v202
    %v204 = vpop.xlane.xlu0 %203
    %v205 = vmul.f32 %v201, %v192
    %v206 = vmul.f32 %v204, %v192
    %v207 = vadd.f32 %v205, 1e-06
    %v208 = vadd.f32 %v206, 1e-06
    %v209 = vrsqrt.pop %v207
    %v210 = vrsqrt.pop %v208
    %v211 = vmul.f32 %v195, %v209
    %v212 = vmul.f32 %v196, %v210
    %v213 = vlaneseq
    %v214 = vshrl.u32 %v213, 7
    %v215 = vsub.s32 0, %v214
    %v216 = vrot.slane %v184, %v215
    %v217 = vmul.f32 %v211, %v216
    %v218 = vmul.f32 %v212, %v216
    %v219 = vlaneseq
    %v220 = vshrl.u32 %v219, 7
    %v221 = vsub.s32 1, %v220
    %v222 = vrot.slane %v184, %v221
    %v223 = vadd.f32 %v217, %v222
    %v224 = vadd.f32 %v218, %v222
    %v225 = vpack.c.bf16 %v224, %v223
    %v226 = vld [vmem:[%s3] sm:$0xf]
    %v227 = vld [vmem:[%s3 + $0x4] sm:$0xf]
    %v228 = vld [vmem:[%s3 + $0x8] sm:$0xf]
    %v229 = vld [vmem:[%s3 + $0xc] sm:$0xf]
    %v230 = vlaneseq
    %v231 = vshrl.u32 %v230, 7
    %v232 = vsub.s32 2, %v231
    %v233 = vrot.slane %v184, %v232
    %v238 = vunpack.c.l.b16 %v226
    %v239 = vunpack.c.l.b16 %v227
    %v240 = vunpack.c.l.b16 %v228
    %v241 = vunpack.c.l.b16 %v229
    %v242 = vpack.c.b16 %v239, %v238
    %v243 = vpack.c.b16 %v241, %v240
    %v247 = vsel %vm185, %v225, 0
    %249 = vmatprep.subr.bf16.mxu0 0
    %250 = vmatpush1.bf16.msra.mxu0 %v242
    %251 = vmatprep.subr.bf16.mxu0 0
    %252 = vmatpush1.bf16.msra.mxu0 %v243
    %253 = vmatprep.subr.bf16.mxu0 0
    %254 = vmatpush1.bf16.msra.mxu0 0
    %255 = vmatprep.subr.bf16.mxu0 0
    %256 = vmatpush1.bf16.msra.mxu0 0
    %257 = vmatprep.subr.bf16.mxu0 0
    %258 = vmatpush1.bf16.msra.mxu0 0
    %259 = vmatprep.subr.bf16.mxu0 0
    %260 = vmatpush1.bf16.msra.mxu0 0
    %261 = vmatprep.subr.bf16.mxu0 0
    %262 = vmatpush1.bf16.msra.mxu0 0
    %263 = vmatprep.subr.bf16.mxu0 0
    %264 = vmatpush1.bf16.msra.mxu0 0
    %265 = vmatprep.subr.bf16.mxu0 0
    %266 = vmatpush1.bf16.msra.mxu0 0
    %267 = vmatprep.subr.bf16.mxu0 0
    %268 = vmatpush1.bf16.msra.mxu0 0
    %269 = vmatprep.subr.bf16.mxu0 0
    %270 = vmatpush1.bf16.msra.mxu0 0
    %271 = vmatprep.subr.bf16.mxu0 0
    %272 = vmatpush1.bf16.msra.mxu0 0
    %273 = vmatprep.subr.bf16.mxu0 0
    %274 = vmatpush1.bf16.msra.mxu0 0
    %275 = vmatprep.subr.bf16.mxu0 0
    %276 = vmatpush1.bf16.msra.mxu0 0
    %277 = vmatprep.subr.bf16.mxu0 0
    %278 = vmatpush1.bf16.msra.mxu0 0
    %279 = vmatprep.subr.bf16.mxu0 0
    %280 = vmatpush1.bf16.msra.mxu0 0
    %281 = vmatprep.mubr.bf16.mxu0 0
    %282 = vmatmul.mubr.bf16.gmra.mrb[0].mxu0 %v247
    %v283 = vpop.f32.mrb[0].mxu0
    %v284 = vadd.f32 %v233, %v283
    %v285 = vpop.f32.mrb[0].mxu0
    %v286 = vpop.f32.mrb[0].mxu0
    %v287 = vadd.f32 %v233, %v286
    %v288 = vpop.f32.mrb[0].mxu0
    %289 = vdwg.mxu0
    %v290 = vpack.c.bf16 %v287, %v284
    %v299 = vunpack.c.l.b16 %v24
    %v300 = vunpack.c.l.b16 %v25
    %v301 = vunpack.c.l.b16 %v26
    %v302 = vunpack.c.l.b16 %v27
    %v303 = vunpack.c.l.b16 %v28
    %v304 = vunpack.c.l.b16 %v29
    %v305 = vunpack.c.l.b16 %v30
    %v306 = vunpack.c.l.b16 %v31
    %v307 = vpack.c.b16 %v300, %v299
    %v308 = vpack.c.b16 %v302, %v301
    %v309 = vpack.c.b16 %v304, %v303
    %v310 = vpack.c.b16 %v306, %v305
    %311 = vrot.lane.b32.xlu0 %v307, 32
    %v312 = vpop.permute.xlu0 %311
    %313 = vrot.lane.b32.xlu0 %v308, 32
    %v314 = vpop.permute.xlu0 %313
    %315 = vrot.lane.b32.xlu0 %v309, 32
    %v316 = vpop.permute.xlu0 %315
    %317 = vrot.lane.b32.xlu0 %v310, 32
    %v318 = vpop.permute.xlu0 %317
    %v323 = vmul.bf16 %v290, %v312
    %v324 = vmul.bf16 %v290, %v314
    %v325 = vmul.bf16 %v290, %v316
    %v326 = vmul.bf16 %v290, %v318
    %327 = vrot.lane.b32.xlu0 %v307, 64
    %v328 = vpop.permute.xlu0 %327
    %329 = vrot.lane.b32.xlu0 %v308, 64
    %v330 = vpop.permute.xlu0 %329
    %331 = vrot.lane.b32.xlu0 %v309, 64
    %v332 = vpop.permute.xlu0 %331
    %333 = vrot.lane.b32.xlu0 %v310, 64
    %v334 = vpop.permute.xlu0 %333
    %v339 = vmul.bf16 %v290, %v328
    %v340 = vmul.bf16 %v290, %v330
    %v341 = vmul.bf16 %v290, %v332
    %v342 = vmul.bf16 %v290, %v334
    %347 = vrot.lane.b32.xlu0 %v323, 96
    %v348 = vpop.permute.xlu0 %347
    %349 = vrot.lane.b32.xlu0 %v324, 96
    %v350 = vpop.permute.xlu0 %349
    %351 = vrot.lane.b32.xlu0 %v325, 96
    %v352 = vpop.permute.xlu0 %351
    %353 = vrot.lane.b32.xlu0 %v326, 96
    %v354 = vpop.permute.xlu0 %353
    %357 = vrot.lane.b32.xlu0 %v22, 96
    %v358 = vpop.permute.xlu0 %357
    %359 = vrot.lane.b32.xlu0 %v23, 96
    %v360 = vpop.permute.xlu0 %359
    %v364 = vsel %vm185, %v290, 0
    %v367 = vsel %vm185, %v348, 0
    %v370 = vsel %vm185, %v350, 0
    %v373 = vsel %vm185, %v352, 0
    %v376 = vsel %vm185, %v354, 0
    %378 = vmatprep.subr.bf16.mxu0 0
    %379 = vmatpush1.bf16.xpose.msra.mxu0 %v367
    %380 = vmatprep.subr.bf16.mxu0 0
    %381 = vmatpush1.bf16.xpose.msra.mxu0 %v370
    %382 = vmatprep.subr.bf16.mxu0 0
    %383 = vmatpush1.bf16.xpose.msra.mxu0 %v373
    %384 = vmatprep.subr.bf16.mxu0 0
    %385 = vmatpush1.bf16.xpose.msra.mxu0 %v376
    %386 = vmatprep.subr.bf16.mxu0 0
    %387 = vmatpush1.bf16.xpose.msra.mxu0 0
    %388 = vmatprep.subr.bf16.mxu0 0
    %389 = vmatpush1.bf16.xpose.msra.mxu0 0
    %390 = vmatprep.subr.bf16.mxu0 0
    %391 = vmatpush1.bf16.xpose.msra.mxu0 0
    %392 = vmatprep.subr.bf16.mxu0 0
    %393 = vmatpush1.bf16.xpose.msra.mxu0 0
    %394 = vmatprep.subr.bf16.mxu0 0
    %395 = vmatpush1.bf16.xpose.msra.mxu0 0
    %396 = vmatprep.subr.bf16.mxu0 0
    %397 = vmatpush1.bf16.xpose.msra.mxu0 0
    %398 = vmatprep.subr.bf16.mxu0 0
    %399 = vmatpush1.bf16.xpose.msra.mxu0 0
    %400 = vmatprep.subr.bf16.mxu0 0
    %401 = vmatpush1.bf16.xpose.msra.mxu0 0
    %402 = vmatprep.subr.bf16.mxu0 0
    %403 = vmatpush1.bf16.xpose.msra.mxu0 0
    %404 = vmatprep.subr.bf16.mxu0 0
    %405 = vmatpush1.bf16.xpose.msra.mxu0 0
    %406 = vmatprep.subr.bf16.mxu0 0
    %407 = vmatpush1.bf16.xpose.msra.mxu0 0
    %408 = vmatprep.subr.bf16.mxu0 0
    %409 = vmatpush1.bf16.xpose.msra.mxu0 0
    %410 = vmatprep.mubr.bf16.mxu0 0
    %411 = vmatmul.mubr.bf16.gmra.mrb[0].mxu0 %v364
    %v412 = vpop.f32.mrb[0].mxu0
    %v413 = vadd.f32 %v358, %v412
    %v414 = vpop.f32.mrb[0].mxu0
    %v415 = vpop.f32.mrb[0].mxu0
    %v416 = vadd.f32 %v360, %v415
    %v417 = vpop.f32.mrb[0].mxu0
    %418 = vdwg.mxu0
    %v419 = vsel %vm139, %v413, -inf
    %420 = vmax.xlane.f32.xlu0 %v419
    %v421 = vpop.xlane.xlu0 %420
    %v422 = vsel %vm139, %v416, -inf
    %423 = vmax.xlane.f32.xlu0 %v422
    %v424 = vpop.xlane.xlu0 %423
    %v425 = vsub.f32 %v413, %v421
    %v426 = vsub.f32 %v416, %v424
    %v427 = vmul.f32 %v425, 1.442695
    %v428 = vpow.pop %v427
    %v429 = vmul.f32 %v426, 1.442695
    %v430 = vpow.pop %v429
    %v431 = vpack.c.bf16 %v430, %v428
    %436 = vrot.lane.b32.xlu0 %v339, 64
    %v437 = vpop.permute.xlu0 %436
    %438 = vrot.lane.b32.xlu0 %v340, 64
    %v439 = vpop.permute.xlu0 %438
    %440 = vrot.lane.b32.xlu0 %v341, 64
    %v441 = vpop.permute.xlu0 %440
    %442 = vrot.lane.b32.xlu0 %v342, 64
    %v443 = vpop.permute.xlu0 %442
    %v446 = vsel %vm185, %v437, %v312
    %v450 = vsel %vm185, %v439, %v314
    %v454 = vsel %vm185, %v441, %v316
    %v458 = vsel %vm185, %v443, %v318
    %v461 = vsel %vm139, %v431, 0
    %463 = vmatprep.subr.bf16.mxu0 0
    %464 = vmatpush1.bf16.msra.mxu0 %v446
    %465 = vmatprep.subr.bf16.mxu0 0
    %466 = vmatpush1.bf16.msra.mxu0 %v450
    %467 = vmatprep.subr.bf16.mxu0 0
    %468 = vmatpush1.bf16.msra.mxu0 %v454
    %469 = vmatprep.subr.bf16.mxu0 0
    %470 = vmatpush1.bf16.msra.mxu0 %v458
    %471 = vmatprep.subr.bf16.mxu0 0
    %472 = vmatpush1.bf16.msra.mxu0 0
    %473 = vmatprep.subr.bf16.mxu0 0
    %474 = vmatpush1.bf16.msra.mxu0 0
    %475 = vmatprep.subr.bf16.mxu0 0
    %476 = vmatpush1.bf16.msra.mxu0 0
    %477 = vmatprep.subr.bf16.mxu0 0
    %478 = vmatpush1.bf16.msra.mxu0 0
    %479 = vmatprep.subr.bf16.mxu0 0
    %480 = vmatpush1.bf16.msra.mxu0 0
    %481 = vmatprep.subr.bf16.mxu0 0
    %482 = vmatpush1.bf16.msra.mxu0 0
    %483 = vmatprep.subr.bf16.mxu0 0
    %484 = vmatpush1.bf16.msra.mxu0 0
    %485 = vmatprep.subr.bf16.mxu0 0
    %486 = vmatpush1.bf16.msra.mxu0 0
    %487 = vmatprep.subr.bf16.mxu0 0
    %488 = vmatpush1.bf16.msra.mxu0 0
    %489 = vmatprep.subr.bf16.mxu0 0
    %490 = vmatpush1.bf16.msra.mxu0 0
    %491 = vmatprep.subr.bf16.mxu0 0
    %492 = vmatpush1.bf16.msra.mxu0 0
    %493 = vmatprep.subr.bf16.mxu0 0
    %494 = vmatpush1.bf16.msra.mxu0 0
    %495 = vmatprep.mubr.bf16.mxu0 0
    %496 = vmatmul.mubr.bf16.gmra.mrb[0].mxu0 %v461
    %v497 = vpop.f32.mrb[0].mxu0
    %v498 = vadd.f32 0.0, %v497
    %v499 = vpop.f32.mrb[0].mxu0
    %v500 = vpop.f32.mrb[0].mxu0
    %v501 = vadd.f32 0.0, %v500
    %v502 = vpop.f32.mrb[0].mxu0
    %503 = vdwg.mxu0
    %v504 = vrcp.pop %v498
    %v505 = vrcp.pop %v501
    %508 = vrot.lane.b32.xlu0 %v504, 96
    %v509 = vpop.permute.xlu0 %508
    %510 = vrot.lane.b32.xlu0 %v505, 96
    %v511 = vpop.permute.xlu0 %510
    %v514 = vmul.f32 %v498, %v509
    %v515 = vmul.f32 %v501, %v511
    %v516 = vpack.c.bf16 %v515, %v514
    %v517 = vld [vmem:[%s2 + $0x90] sm:$0xf]
    %v518 = vld [vmem:[%s2 + $0x94] sm:$0xf]
    %v519 = vld [vmem:[%s2 + $0x98] sm:$0xf]
    %v520 = vld [vmem:[%s2 + $0x9c] sm:$0xf]
    %v525 = vunpack.c.l.b16 %v517
    %v526 = vunpack.c.l.b16 %v518
    %v527 = vunpack.c.l.b16 %v519
    %v528 = vunpack.c.l.b16 %v520
    %v529 = vpack.c.b16 %v526, %v525
    %v530 = vpack.c.b16 %v528, %v527
    %v534 = vsel %vm185, %v516, 0
    %536 = vmatprep.subr.bf16.mxu0 0
    %537 = vmatpush1.bf16.msra.mxu0 %v529
    %538 = vmatprep.subr.bf16.mxu0 0
    %539 = vmatpush1.bf16.msra.mxu0 %v530
    %540 = vmatprep.subr.bf16.mxu0 0
    %541 = vmatpush1.bf16.msra.mxu0 0
    %542 = vmatprep.subr.bf16.mxu0 0
    %543 = vmatpush1.bf16.msra.mxu0 0
    %544 = vmatprep.subr.bf16.mxu0 0
    %545 = vmatpush1.bf16.msra.mxu0 0
    %546 = vmatprep.subr.bf16.mxu0 0
    %547 = vmatpush1.bf16.msra.mxu0 0
    %548 = vmatprep.subr.bf16.mxu0 0
    %549 = vmatpush1.bf16.msra.mxu0 0
    %550 = vmatprep.subr.bf16.mxu0 0
    %551 = vmatpush1.bf16.msra.mxu0 0
    %552 = vmatprep.subr.bf16.mxu0 0
    %553 = vmatpush1.bf16.msra.mxu0 0
    %554 = vmatprep.subr.bf16.mxu0 0
    %555 = vmatpush1.bf16.msra.mxu0 0
    %556 = vmatprep.subr.bf16.mxu0 0
    %557 = vmatpush1.bf16.msra.mxu0 0
    %558 = vmatprep.subr.bf16.mxu0 0
    %559 = vmatpush1.bf16.msra.mxu0 0
    %560 = vmatprep.subr.bf16.mxu0 0
    %561 = vmatpush1.bf16.msra.mxu0 0
    %562 = vmatprep.subr.bf16.mxu0 0
    %563 = vmatpush1.bf16.msra.mxu0 0
    %564 = vmatprep.subr.bf16.mxu0 0
    %565 = vmatpush1.bf16.msra.mxu0 0
    %566 = vmatprep.subr.bf16.mxu0 0
    %567 = vmatpush1.bf16.msra.mxu0 0
    %568 = vmatprep.mubr.bf16.mxu0 0
    %569 = vmatmul.mubr.bf16.gmra.mrb[0].mxu0 %v534
    %v570 = vpop.f32.mrb[0].mxu0
    %v571 = vadd.f32 0.0, %v570
    %v572 = vpop.f32.mrb[0].mxu0
    %v573 = vpop.f32.mrb[0].mxu0
    %v574 = vadd.f32 0.0, %v573
    %v575 = vpop.f32.mrb[0].mxu0
    %576 = vdwg.mxu0
    %v577 = vadd.f32 %v178, %v571
    %v578 = vadd.f32 %v181, %v574
    %v579 = vlaneseq
    %v580 = vshrl.u32 %v579, 7
    %v581 = vsub.s32 3, %v580
    %v582 = vrot.slane %v184, %v581
    %v583 = vadd.f32 %v577, %v582
    %v584 = vadd.f32 %v578, %v582
    %v585 = vsel %vm185, %v583, 0.0
    %586 = vadd.xlane.f32.xlu0 %v585
    %v587 = vpop.xlane.xlu0 %586
    %v588 = vsel %vm185, %v584, 0.0
    %589 = vadd.xlane.f32.xlu0 %v588
    %v590 = vpop.xlane.xlu0 %589
    %v591 = vmul.f32 %v587, %v192
    %v592 = vmul.f32 %v590, %v192
    %v593 = vsub.f32 %v583, %v591
    %v594 = vsub.f32 %v584, %v592
    %v595 = vmul.f32 %v593, %v593
    %v596 = vmul.f32 %v594, %v594
    %v597 = vsel %vm185, %v595, 0.0
    %598 = vadd.xlane.f32.xlu0 %v597
    %v599 = vpop.xlane.xlu0 %598
    %v600 = vsel %vm185, %v596, 0.0
    %601 = vadd.xlane.f32.xlu0 %v600
    %v602 = vpop.xlane.xlu0 %601
    %v603 = vmul.f32 %v599, %v192
    %v604 = vmul.f32 %v602, %v192
    %v605 = vadd.f32 %v603, 1e-06
    %v606 = vadd.f32 %v604, 1e-06
    %v607 = vrsqrt.pop %v605
    %v608 = vrsqrt.pop %v606
    %v609 = vmul.f32 %v593, %v607
    %v610 = vmul.f32 %v594, %v608
    %v611 = vlaneseq
    %v612 = vshrl.u32 %v611, 7
    %v613 = vsub.s32 4, %v612
    %v614 = vrot.slane %v184, %v613
    %v615 = vmul.f32 %v609, %v614
    %v616 = vmul.f32 %v610, %v614
    %v617 = vlaneseq
    %v618 = vshrl.u32 %v617, 7
    %v619 = vsub.s32 5, %v618
    %v620 = vrot.slane %v184, %v619
    %v621 = vadd.f32 %v615, %v620
    %v622 = vadd.f32 %v616, %v620
    %v623 = vpack.c.bf16 %v622, %v621
    %v624 = vld [vmem:[%s3 + $0x10] sm:$0xf]
    %v625 = vld [vmem:[%s3 + $0x14] sm:$0xf]
    %v626 = vld [vmem:[%s3 + $0x18] sm:$0xf]
    %v627 = vld [vmem:[%s3 + $0x1c] sm:$0xf]
    %v628 = vlaneseq
    %v629 = vshrl.u32 %v628, 7
    %v630 = vsub.s32 6, %v629
    %v631 = vrot.slane %v184, %v630
    %v636 = vunpack.c.l.b16 %v624
    %v637 = vunpack.c.l.b16 %v625
    %v638 = vunpack.c.l.b16 %v626
    %v639 = vunpack.c.l.b16 %v627
    %v640 = vpack.c.b16 %v637, %v636
    %v641 = vpack.c.b16 %v639, %v638
    %v645 = vsel %vm185, %v623, 0
    %647 = vmatprep.subr.bf16.mxu0 0
    %648 = vmatpush1.bf16.msra.mxu0 %v640
    %649 = vmatprep.subr.bf16.mxu0 0
    %650 = vmatpush1.bf16.msra.mxu0 %v641
    %651 = vmatprep.subr.bf16.mxu0 0
    %652 = vmatpush1.bf16.msra.mxu0 0
    %653 = vmatprep.subr.bf16.mxu0 0
    %654 = vmatpush1.bf16.msra.mxu0 0
    %655 = vmatprep.subr.bf16.mxu0 0
    %656 = vmatpush1.bf16.msra.mxu0 0
    %657 = vmatprep.subr.bf16.mxu0 0
    %658 = vmatpush1.bf16.msra.mxu0 0
    %659 = vmatprep.subr.bf16.mxu0 0
    %660 = vmatpush1.bf16.msra.mxu0 0
    %661 = vmatprep.subr.bf16.mxu0 0
    %662 = vmatpush1.bf16.msra.mxu0 0
    %663 = vmatprep.subr.bf16.mxu0 0
    %664 = vmatpush1.bf16.msra.mxu0 0
    %665 = vmatprep.subr.bf16.mxu0 0
    %666 = vmatpush1.bf16.msra.mxu0 0
    %667 = vmatprep.subr.bf16.mxu0 0
    %668 = vmatpush1.bf16.msra.mxu0 0
    %669 = vmatprep.subr.bf16.mxu0 0
    %670 = vmatpush1.bf16.msra.mxu0 0
    %671 = vmatprep.subr.bf16.mxu0 0
    %672 = vmatpush1.bf16.msra.mxu0 0
    %673 = vmatprep.subr.bf16.mxu0 0
    %674 = vmatpush1.bf16.msra.mxu0 0
    %675 = vmatprep.subr.bf16.mxu0 0
    %676 = vmatpush1.bf16.msra.mxu0 0
    %677 = vmatprep.subr.bf16.mxu0 0
    %678 = vmatpush1.bf16.msra.mxu0 0
    %679 = vmatprep.mubr.bf16.mxu0 0
    %680 = vmatmul.mubr.bf16.gmra.mrb[0].mxu0 %v645
    %v681 = vpop.f32.mrb[0].mxu0
    %v682 = vadd.f32 %v631, %v681
    %v683 = vpop.f32.mrb[0].mxu0
    %v684 = vpop.f32.mrb[0].mxu0
    %v685 = vadd.f32 %v631, %v684
    %v686 = vpop.f32.mrb[0].mxu0
    %687 = vdwg.mxu0
    %v688 = vmul.f32 %v682, %v682
    %v689 = vmul.f32 %v685, %v685
    %v690 = vmul.f32 %v682, %v688
    %v691 = vmul.f32 %v685, %v689
    %v692 = vmul.f32 %v690, 0.044715
    %v693 = vmul.f32 %v691, 0.044715
    %v694 = vadd.f32 %v682, %v692
    %v695 = vadd.f32 %v685, %v693
    %v696 = vmul.f32 %v694, 0.7978846
    %v697 = vmul.f32 %v695, 0.7978846
    %v698 = vtanh.pop %v696
    %v699 = vtanh.pop %v697
    %v700 = vadd.f32 %v698, 1.0
    %v701 = vadd.f32 %v699, 1.0
    %v702 = vmul.f32 %v700, 0.5
    %v703 = vmul.f32 %v701, 0.5
    %v704 = vmul.f32 %v682, %v702
    %v705 = vmul.f32 %v685, %v703
    %v706 = vpack.c.bf16 %v705, %v704
    %v707 = vld [vmem:[%s2 + $0xb0] sm:$0xf]
    %v708 = vld [vmem:[%s2 + $0xb4] sm:$0xf]
    %v709 = vld [vmem:[%s2 + $0xb8] sm:$0xf]
    %v710 = vld [vmem:[%s2 + $0xbc] sm:$0xf]
    %v711 = vld [vmem:[%s2 + $0xc0] sm:$0xf]
    %v712 = vld [vmem:[%s2 + $0xc4] sm:$0xf]
    %v713 = vld [vmem:[%s2 + $0xc8] sm:$0xf]
    %v714 = vld [vmem:[%s2 + $0xcc] sm:$0xf]
    %v715 = vld [vmem:[%s2 + $0xd0] sm:$0xf]
    %v716 = vld [vmem:[%s2 + $0xd4] sm:$0xf]
    %v717 = vld [vmem:[%s2 + $0xd8] sm:$0xf]
    %v718 = vld [vmem:[%s2 + $0xdc] sm:$0xf]
    %v719 = vld [vmem:[%s2 + $0xe0] sm:$0xf]
    %v720 = vld [vmem:[%s2 + $0xe4] sm:$0xf]
    %v721 = vld [vmem:[%s2 + $0xe8] sm:$0xf]
    %v722 = vld [vmem:[%s2 + $0xec] sm:$0xf]
    %v739 = vunpack.c.l.b16 %v707
    %v740 = vunpack.c.l.b16 %v708
    %v741 = vunpack.c.l.b16 %v709
    %v742 = vunpack.c.l.b16 %v710
    %v743 = vunpack.c.l.b16 %v711
    %v744 = vunpack.c.l.b16 %v712
    %v745 = vunpack.c.l.b16 %v713
    %v746 = vunpack.c.l.b16 %v714
    %v747 = vunpack.c.l.b16 %v715
    %v748 = vunpack.c.l.b16 %v716
    %v749 = vunpack.c.l.b16 %v717
    %v750 = vunpack.c.l.b16 %v718
    %v751 = vunpack.c.l.b16 %v719
    %v752 = vunpack.c.l.b16 %v720
    %v753 = vunpack.c.l.b16 %v721
    %v754 = vunpack.c.l.b16 %v722
    %v755 = vpack.c.b16 %v740, %v739
    %v756 = vpack.c.b16 %v742, %v741
    %v757 = vpack.c.b16 %v744, %v743
    %v758 = vpack.c.b16 %v746, %v745
    %v759 = vpack.c.b16 %v748, %v747
    %v760 = vpack.c.b16 %v750, %v749
    %v761 = vpack.c.b16 %v752, %v751
    %v762 = vpack.c.b16 %v754, %v753
    %771 = vmatprep.subr.bf16.mxu0 0
    %772 = vmatpush1.bf16.msra.mxu0 %v755
    %773 = vmatprep.subr.bf16.mxu0 0
    %774 = vmatpush1.bf16.msra.mxu0 %v756
    %775 = vmatprep.subr.bf16.mxu0 0
    %776 = vmatpush1.bf16.msra.mxu0 %v757
    %777 = vmatprep.subr.bf16.mxu0 0
    %778 = vmatpush1.bf16.msra.mxu0 %v758
    %779 = vmatprep.subr.bf16.mxu0 0
    %780 = vmatpush1.bf16.msra.mxu0 %v759
    %781 = vmatprep.subr.bf16.mxu0 0
    %782 = vmatpush1.bf16.msra.mxu0 %v760
    %783 = vmatprep.subr.bf16.mxu0 0
    %784 = vmatpush1.bf16.msra.mxu0 %v761
    %785 = vmatprep.subr.bf16.mxu0 0
    %786 = vmatpush1.bf16.msra.mxu0 %v762
    %787 = vmatprep.subr.bf16.mxu0 0
    %788 = vmatpush1.bf16.msra.mxu0 0
    %789 = vmatprep.subr.bf16.mxu0 0
    %790 = vmatpush1.bf16.msra.mxu0 0
    %791 = vmatprep.subr.bf16.mxu0 0
    %792 = vmatpush1.bf16.msra.mxu0 0
    %793 = vmatprep.subr.bf16.mxu0 0
    %794 = vmatpush1.bf16.msra.mxu0 0
    %795 = vmatprep.subr.bf16.mxu0 0
    %796 = vmatpush1.bf16.msra.mxu0 0
    %797 = vmatprep.subr.bf16.mxu0 0
    %798 = vmatpush1.bf16.msra.mxu0 0
    %799 = vmatprep.subr.bf16.mxu0 0
    %800 = vmatpush1.bf16.msra.mxu0 0
    %801 = vmatprep.subr.bf16.mxu0 0
    %802 = vmatpush1.bf16.msra.mxu0 0
    %803 = vmatprep.mubr.bf16.mxu0 0
    %804 = vmatmul.mubr.bf16.gmra.mrb[0].mxu0 %v706
    %v805 = vpop.f32.mrb[0].mxu0
    %v806 = vadd.f32 0.0, %v805
    %v807 = vpop.f32.mrb[0].mxu0
    %v808 = vpop.f32.mrb[0].mxu0
    %v809 = vadd.f32 0.0, %v808
    %v810 = vpop.f32.mrb[0].mxu0
    %811 = vdwg.mxu0
    %v812 = vadd.f32 %v583, %v806
    %v813 = vadd.f32 %v584, %v809
    %v814 = vlaneseq
    %v815 = vshrl.u32 %v814, 7
    %v816 = vsub.s32 7, %v815
    %v817 = vrot.slane %v184, %v816
    %v818 = vadd.f32 %v812, %v817
    %v819 = vadd.f32 %v813, %v817
    %v820 = vld [vmem:[%s4 + $0x8] sm:$0xff]
    %v821 = vsel %vm185, %v818, 0.0
    %822 = vadd.xlane.f32.xlu0 %v821
    %v823 = vpop.xlane.xlu0 %822
    %v824 = vsel %vm185, %v819, 0.0
    %825 = vadd.xlane.f32.xlu0 %v824
    %v826 = vpop.xlane.xlu0 %825
    %v827 = vmul.f32 %v823, %v192
    %v828 = vmul.f32 %v826, %v192
    %v829 = vsub.f32 %v818, %v827
    %v830 = vsub.f32 %v819, %v828
    %v831 = vmul.f32 %v829, %v829
    %v832 = vmul.f32 %v830, %v830
    %v833 = vsel %vm185, %v831, 0.0
    %834 = vadd.xlane.f32.xlu0 %v833
    %v835 = vpop.xlane.xlu0 %834
    %v836 = vsel %vm185, %v832, 0.0
    %837 = vadd.xlane.f32.xlu0 %v836
    %v838 = vpop.xlane.xlu0 %837
    %v839 = vmul.f32 %v835, %v192
    %v840 = vmul.f32 %v838, %v192
    %v841 = vadd.f32 %v839, 1e-06
    %v842 = vadd.f32 %v840, 1e-06
    %v843 = vrsqrt.pop %v841
    %v844 = vrsqrt.pop %v842
    %v845 = vmul.f32 %v829, %v843
    %v846 = vmul.f32 %v830, %v844
    %v847 = vlaneseq
    %v848 = vshrl.u32 %v847, 7
    %v849 = vsub.s32 0, %v848
    %v850 = vrot.slane %v820, %v849
    %v851 = vmul.f32 %v845, %v850
    %v852 = vmul.f32 %v846, %v850
    %v853 = vlaneseq
    %v854 = vshrl.u32 %v853, 7
    %v855 = vsub.s32 1, %v854
    %v856 = vrot.slane %v820, %v855
    %v857 = vadd.f32 %v851, %v856
    %v858 = vadd.f32 %v852, %v856
    %v859 = vpack.c.bf16 %v858, %v857
    %v860 = vld [vmem:[%s3 + $0x20] sm:$0xf]
    %v861 = vld [vmem:[%s3 + $0x24] sm:$0xf]
    %v862 = vld [vmem:[%s3 + $0x28] sm:$0xf]
    %v863 = vld [vmem:[%s3 + $0x2c] sm:$0xf]
    %v864 = vlaneseq
    %v865 = vshrl.u32 %v864, 7
    %v866 = vsub.s32 2, %v865
    %v867 = vrot.slane %v820, %v866
    %v872 = vunpack.c.l.b16 %v860
    %v873 = vunpack.c.l.b16 %v861
    %v874 = vunpack.c.l.b16 %v862
    %v875 = vunpack.c.l.b16 %v863
    %v876 = vpack.c.b16 %v873, %v872
    %v877 = vpack.c.b16 %v875, %v874
    %v881 = vsel %vm185, %v859, 0
    %883 = vmatprep.subr.bf16.mxu0 0
    %884 = vmatpush1.bf16.msra.mxu0 %v876
    %885 = vmatprep.subr.bf16.mxu0 0
    %886 = vmatpush1.bf16.msra.mxu0 %v877
    %887 = vmatprep.subr.bf16.mxu0 0
    %888 = vmatpush1.bf16.msra.mxu0 0
    %889 = vmatprep.subr.bf16.mxu0 0
    %890 = vmatpush1.bf16.msra.mxu0 0
    %891 = vmatprep.subr.bf16.mxu0 0
    %892 = vmatpush1.bf16.msra.mxu0 0
    %893 = vmatprep.subr.bf16.mxu0 0
    %894 = vmatpush1.bf16.msra.mxu0 0
    %895 = vmatprep.subr.bf16.mxu0 0
    %896 = vmatpush1.bf16.msra.mxu0 0
    %897 = vmatprep.subr.bf16.mxu0 0
    %898 = vmatpush1.bf16.msra.mxu0 0
    %899 = vmatprep.subr.bf16.mxu0 0
    %900 = vmatpush1.bf16.msra.mxu0 0
    %901 = vmatprep.subr.bf16.mxu0 0
    %902 = vmatpush1.bf16.msra.mxu0 0
    %903 = vmatprep.subr.bf16.mxu0 0
    %904 = vmatpush1.bf16.msra.mxu0 0
    %905 = vmatprep.subr.bf16.mxu0 0
    %906 = vmatpush1.bf16.msra.mxu0 0
    %907 = vmatprep.subr.bf16.mxu0 0
    %908 = vmatpush1.bf16.msra.mxu0 0
    %909 = vmatprep.subr.bf16.mxu0 0
    %910 = vmatpush1.bf16.msra.mxu0 0
    %911 = vmatprep.subr.bf16.mxu0 0
    %912 = vmatpush1.bf16.msra.mxu0 0
    %913 = vmatprep.subr.bf16.mxu0 0
    %914 = vmatpush1.bf16.msra.mxu0 0
    %915 = vmatprep.mubr.bf16.mxu0 0
    %916 = vmatmul.mubr.bf16.gmra.mrb[0].mxu0 %v881
    %v917 = vpop.f32.mrb[0].mxu0
    %v918 = vadd.f32 %v867, %v917
    %v919 = vpop.f32.mrb[0].mxu0
    %v920 = vpop.f32.mrb[0].mxu0
    %v921 = vadd.f32 %v867, %v920
    %v922 = vpop.f32.mrb[0].mxu0
    %923 = vdwg.mxu0
    %v924 = vpack.c.bf16 %v921, %v918
    %v925 = vmul.bf16 %v924, %v312
    %v926 = vmul.bf16 %v924, %v314
    %v927 = vmul.bf16 %v924, %v316
    %v928 = vmul.bf16 %v924, %v318
    %v929 = vmul.bf16 %v924, %v328
    %v930 = vmul.bf16 %v924, %v330
    %v931 = vmul.bf16 %v924, %v332
    %v932 = vmul.bf16 %v924, %v334
    %937 = vrot.lane.b32.xlu0 %v925, 96
    %v938 = vpop.permute.xlu0 %937
    %939 = vrot.lane.b32.xlu0 %v926, 96
    %v940 = vpop.permute.xlu0 %939
    %941 = vrot.lane.b32.xlu0 %v927, 96
    %v942 = vpop.permute.xlu0 %941
    %943 = vrot.lane.b32.xlu0 %v928, 96
    %v944 = vpop.permute.xlu0 %943
    %v946 = vsel %vm185, %v924, 0
    %v949 = vsel %vm185, %v938, 0
    %v952 = vsel %vm185, %v940, 0
    %v955 = vsel %vm185, %v942, 0
    %v958 = vsel %vm185, %v944, 0
    %960 = vmatprep.subr.bf16.mxu0 0
    %961 = vmatpush1.bf16.xpose.msra.mxu0 %v949
    %962 = vmatprep.subr.bf16.mxu0 0
    %963 = vmatpush1.bf16.xpose.msra.mxu0 %v952
    %964 = vmatprep.subr.bf16.mxu0 0
    %965 = vmatpush1.bf16.xpose.msra.mxu0 %v955
    %966 = vmatprep.subr.bf16.mxu0 0
    %967 = vmatpush1.bf16.xpose.msra.mxu0 %v958
    %968 = vmatprep.subr.bf16.mxu0 0
    %969 = vmatpush1.bf16.xpose.msra.mxu0 0
    %970 = vmatprep.subr.bf16.mxu0 0
    %971 = vmatpush1.bf16.xpose.msra.mxu0 0
    %972 = vmatprep.subr.bf16.mxu0 0
    %973 = vmatpush1.bf16.xpose.msra.mxu0 0
    %974 = vmatprep.subr.bf16.mxu0 0
    %975 = vmatpush1.bf16.xpose.msra.mxu0 0
    %976 = vmatprep.subr.bf16.mxu0 0
    %977 = vmatpush1.bf16.xpose.msra.mxu0 0
    %978 = vmatprep.subr.bf16.mxu0 0
    %979 = vmatpush1.bf16.xpose.msra.mxu0 0
    %980 = vmatprep.subr.bf16.mxu0 0
    %981 = vmatpush1.bf16.xpose.msra.mxu0 0
    %982 = vmatprep.subr.bf16.mxu0 0
    %983 = vmatpush1.bf16.xpose.msra.mxu0 0
    %984 = vmatprep.subr.bf16.mxu0 0
    %985 = vmatpush1.bf16.xpose.msra.mxu0 0
    %986 = vmatprep.subr.bf16.mxu0 0
    %987 = vmatpush1.bf16.xpose.msra.mxu0 0
    %988 = vmatprep.subr.bf16.mxu0 0
    %989 = vmatpush1.bf16.xpose.msra.mxu0 0
    %990 = vmatprep.subr.bf16.mxu0 0
    %991 = vmatpush1.bf16.xpose.msra.mxu0 0
    %992 = vmatprep.mubr.bf16.mxu0 0
    %993 = vmatmul.mubr.bf16.gmra.mrb[0].mxu0 %v946
    %v994 = vpop.f32.mrb[0].mxu0
    %v995 = vadd.f32 %v358, %v994
    %v996 = vpop.f32.mrb[0].mxu0
    %v997 = vpop.f32.mrb[0].mxu0
    %v998 = vadd.f32 %v360, %v997
    %v999 = vpop.f32.mrb[0].mxu0
    %1000 = vdwg.mxu0
    %v1001 = vsel %vm139, %v995, -inf
    %1002 = vmax.xlane.f32.xlu0 %v1001
    %v1003 = vpop.xlane.xlu0 %1002
    %v1004 = vsel %vm139, %v998, -inf
    %1005 = vmax.xlane.f32.xlu0 %v1004
    %v1006 = vpop.xlane.xlu0 %1005
    %v1007 = vsub.f32 %v995, %v1003
    %v1008 = vsub.f32 %v998, %v1006
    %v1009 = vmul.f32 %v1007, 1.442695
    %v1010 = vpow.pop %v1009
    %v1011 = vmul.f32 %v1008, 1.442695
    %v1012 = vpow.pop %v1011
    %v1013 = vpack.c.bf16 %v1012, %v1010
    %1018 = vrot.lane.b32.xlu0 %v929, 64
    %v1019 = vpop.permute.xlu0 %1018
    %1020 = vrot.lane.b32.xlu0 %v930, 64
    %v1021 = vpop.permute.xlu0 %1020
    %1022 = vrot.lane.b32.xlu0 %v931, 64
    %v1023 = vpop.permute.xlu0 %1022
    %1024 = vrot.lane.b32.xlu0 %v932, 64
    %v1025 = vpop.permute.xlu0 %1024
    %v1027 = vsel %vm185, %v1019, %v312
    %v1030 = vsel %vm185, %v1021, %v314
    %v1033 = vsel %vm185, %v1023, %v316
    %v1036 = vsel %vm185, %v1025, %v318
    %v1039 = vsel %vm139, %v1013, 0
    %1041 = vmatprep.subr.bf16.mxu0 0
    %1042 = vmatpush1.bf16.msra.mxu0 %v1027
    %1043 = vmatprep.subr.bf16.mxu0 0
    %1044 = vmatpush1.bf16.msra.mxu0 %v1030
    %1045 = vmatprep.subr.bf16.mxu0 0
    %1046 = vmatpush1.bf16.msra.mxu0 %v1033
    %1047 = vmatprep.subr.bf16.mxu0 0
    %1048 = vmatpush1.bf16.msra.mxu0 %v1036
    %1049 = vmatprep.subr.bf16.mxu0 0
    %1050 = vmatpush1.bf16.msra.mxu0 0
    %1051 = vmatprep.subr.bf16.mxu0 0
    %1052 = vmatpush1.bf16.msra.mxu0 0
    %1053 = vmatprep.subr.bf16.mxu0 0
    %1054 = vmatpush1.bf16.msra.mxu0 0
    %1055 = vmatprep.subr.bf16.mxu0 0
    %1056 = vmatpush1.bf16.msra.mxu0 0
    %1057 = vmatprep.subr.bf16.mxu0 0
    %1058 = vmatpush1.bf16.msra.mxu0 0
    %1059 = vmatprep.subr.bf16.mxu0 0
    %1060 = vmatpush1.bf16.msra.mxu0 0
    %1061 = vmatprep.subr.bf16.mxu0 0
    %1062 = vmatpush1.bf16.msra.mxu0 0
    %1063 = vmatprep.subr.bf16.mxu0 0
    %1064 = vmatpush1.bf16.msra.mxu0 0
    %1065 = vmatprep.subr.bf16.mxu0 0
    %1066 = vmatpush1.bf16.msra.mxu0 0
    %1067 = vmatprep.subr.bf16.mxu0 0
    %1068 = vmatpush1.bf16.msra.mxu0 0
    %1069 = vmatprep.subr.bf16.mxu0 0
    %1070 = vmatpush1.bf16.msra.mxu0 0
    %1071 = vmatprep.subr.bf16.mxu0 0
    %1072 = vmatpush1.bf16.msra.mxu0 0
    %1073 = vmatprep.mubr.bf16.mxu0 0
    %1074 = vmatmul.mubr.bf16.gmra.mrb[0].mxu0 %v1039
    %v1075 = vpop.f32.mrb[0].mxu0
    %v1076 = vadd.f32 0.0, %v1075
    %v1077 = vpop.f32.mrb[0].mxu0
    %v1078 = vpop.f32.mrb[0].mxu0
    %v1079 = vadd.f32 0.0, %v1078
    %v1080 = vpop.f32.mrb[0].mxu0
    %1081 = vdwg.mxu0
    %v1082 = vrcp.pop %v1076
    %v1083 = vrcp.pop %v1079
    %1086 = vrot.lane.b32.xlu0 %v1082, 96
    %v1087 = vpop.permute.xlu0 %1086
    %1088 = vrot.lane.b32.xlu0 %v1083, 96
    %v1089 = vpop.permute.xlu0 %1088
    %v1092 = vmul.f32 %v1076, %v1087
    %v1093 = vmul.f32 %v1079, %v1089
    %v1094 = vpack.c.bf16 %v1093, %v1092
    %v1095 = vld [vmem:[%s2 + $0xa0] sm:$0xf]
    %v1096 = vld [vmem:[%s2 + $0xa4] sm:$0xf]
    %v1097 = vld [vmem:[%s2 + $0xa8] sm:$0xf]
    %v1098 = vld [vmem:[%s2 + $0xac] sm:$0xf]
    %v1103 = vunpack.c.l.b16 %v1095
    %v1104 = vunpack.c.l.b16 %v1096
    %v1105 = vunpack.c.l.b16 %v1097
    %v1106 = vunpack.c.l.b16 %v1098
    %v1107 = vpack.c.b16 %v1104, %v1103
    %v1108 = vpack.c.b16 %v1106, %v1105
    %v1112 = vsel %vm185, %v1094, 0
    %1114 = vmatprep.subr.bf16.mxu0 0
    %1115 = vmatpush1.bf16.msra.mxu0 %v1107
    %1116 = vmatprep.subr.bf16.mxu0 0
    %1117 = vmatpush1.bf16.msra.mxu0 %v1108
    %1118 = vmatprep.subr.bf16.mxu0 0
    %1119 = vmatpush1.bf16.msra.mxu0 0
    %1120 = vmatprep.subr.bf16.mxu0 0
    %1121 = vmatpush1.bf16.msra.mxu0 0
    %1122 = vmatprep.subr.bf16.mxu0 0
    %1123 = vmatpush1.bf16.msra.mxu0 0
    %1124 = vmatprep.subr.bf16.mxu0 0
    %1125 = vmatpush1.bf16.msra.mxu0 0
    %1126 = vmatprep.subr.bf16.mxu0 0
    %1127 = vmatpush1.bf16.msra.mxu0 0
    %1128 = vmatprep.subr.bf16.mxu0 0
    %1129 = vmatpush1.bf16.msra.mxu0 0
    %1130 = vmatprep.subr.bf16.mxu0 0
    %1131 = vmatpush1.bf16.msra.mxu0 0
    %1132 = vmatprep.subr.bf16.mxu0 0
    %1133 = vmatpush1.bf16.msra.mxu0 0
    %1134 = vmatprep.subr.bf16.mxu0 0
    %1135 = vmatpush1.bf16.msra.mxu0 0
    %1136 = vmatprep.subr.bf16.mxu0 0
    %1137 = vmatpush1.bf16.msra.mxu0 0
    %1138 = vmatprep.subr.bf16.mxu0 0
    %1139 = vmatpush1.bf16.msra.mxu0 0
    %1140 = vmatprep.subr.bf16.mxu0 0
    %1141 = vmatpush1.bf16.msra.mxu0 0
    %1142 = vmatprep.subr.bf16.mxu0 0
    %1143 = vmatpush1.bf16.msra.mxu0 0
    %1144 = vmatprep.subr.bf16.mxu0 0
    %1145 = vmatpush1.bf16.msra.mxu0 0
    %1146 = vmatprep.mubr.bf16.mxu0 0
    %1147 = vmatmul.mubr.bf16.gmra.mrb[0].mxu0 %v1112
    %v1148 = vpop.f32.mrb[0].mxu0
    %v1149 = vadd.f32 0.0, %v1148
    %v1150 = vpop.f32.mrb[0].mxu0
    %v1151 = vpop.f32.mrb[0].mxu0
    %v1152 = vadd.f32 0.0, %v1151
    %v1153 = vpop.f32.mrb[0].mxu0
    %1154 = vdwg.mxu0
    %v1155 = vadd.f32 %v818, %v1149
    %v1156 = vadd.f32 %v819, %v1152
    %v1157 = vlaneseq
    %v1158 = vshrl.u32 %v1157, 7
    %v1159 = vsub.s32 3, %v1158
    %v1160 = vrot.slane %v820, %v1159
    %v1161 = vadd.f32 %v1155, %v1160
    %v1162 = vadd.f32 %v1156, %v1160
    %v1163 = vsel %vm185, %v1161, 0.0
    %1164 = vadd.xlane.f32.xlu0 %v1163
    %v1165 = vpop.xlane.xlu0 %1164
    %v1166 = vsel %vm185, %v1162, 0.0
    %1167 = vadd.xlane.f32.xlu0 %v1166
    %v1168 = vpop.xlane.xlu0 %1167
    %v1169 = vmul.f32 %v1165, %v192
    %v1170 = vmul.f32 %v1168, %v192
    %v1171 = vsub.f32 %v1161, %v1169
    %v1172 = vsub.f32 %v1162, %v1170
    %v1173 = vmul.f32 %v1171, %v1171
    %v1174 = vmul.f32 %v1172, %v1172
    %v1175 = vsel %vm185, %v1173, 0.0
    %1176 = vadd.xlane.f32.xlu0 %v1175
    %v1177 = vpop.xlane.xlu0 %1176
    %v1178 = vsel %vm185, %v1174, 0.0
    %1179 = vadd.xlane.f32.xlu0 %v1178
    %v1180 = vpop.xlane.xlu0 %1179
    %v1181 = vmul.f32 %v1177, %v192
    %v1182 = vmul.f32 %v1180, %v192
    %v1183 = vadd.f32 %v1181, 1e-06
    %v1184 = vadd.f32 %v1182, 1e-06
    %v1185 = vrsqrt.pop %v1183
    %v1186 = vrsqrt.pop %v1184
    %v1187 = vmul.f32 %v1171, %v1185
    %v1188 = vmul.f32 %v1172, %v1186
    %v1189 = vlaneseq
    %v1190 = vshrl.u32 %v1189, 7
    %v1191 = vsub.s32 4, %v1190
    %v1192 = vrot.slane %v820, %v1191
    %v1193 = vmul.f32 %v1187, %v1192
    %v1194 = vmul.f32 %v1188, %v1192
    %v1195 = vlaneseq
    %v1196 = vshrl.u32 %v1195, 7
    %v1197 = vsub.s32 5, %v1196
    %v1198 = vrot.slane %v820, %v1197
    %v1199 = vadd.f32 %v1193, %v1198
    %v1200 = vadd.f32 %v1194, %v1198
    %v1201 = vpack.c.bf16 %v1200, %v1199
    %v1202 = vld [vmem:[%s3 + $0x30] sm:$0xf]
    %v1203 = vld [vmem:[%s3 + $0x34] sm:$0xf]
    %v1204 = vld [vmem:[%s3 + $0x38] sm:$0xf]
    %v1205 = vld [vmem:[%s3 + $0x3c] sm:$0xf]
    %v1206 = vlaneseq
    %v1207 = vshrl.u32 %v1206, 7
    %v1208 = vsub.s32 6, %v1207
    %v1209 = vrot.slane %v820, %v1208
    %v1214 = vunpack.c.l.b16 %v1202
    %v1215 = vunpack.c.l.b16 %v1203
    %v1216 = vunpack.c.l.b16 %v1204
    %v1217 = vunpack.c.l.b16 %v1205
    %v1218 = vpack.c.b16 %v1215, %v1214
    %v1219 = vpack.c.b16 %v1217, %v1216
    %v1223 = vsel %vm185, %v1201, 0
    %1225 = vmatprep.subr.bf16.mxu0 0
    %1226 = vmatpush1.bf16.msra.mxu0 %v1218
    %1227 = vmatprep.subr.bf16.mxu0 0
    %1228 = vmatpush1.bf16.msra.mxu0 %v1219
    %1229 = vmatprep.subr.bf16.mxu0 0
    %1230 = vmatpush1.bf16.msra.mxu0 0
    %1231 = vmatprep.subr.bf16.mxu0 0
    %1232 = vmatpush1.bf16.msra.mxu0 0
    %1233 = vmatprep.subr.bf16.mxu0 0
    %1234 = vmatpush1.bf16.msra.mxu0 0
    %1235 = vmatprep.subr.bf16.mxu0 0
    %1236 = vmatpush1.bf16.msra.mxu0 0
    %1237 = vmatprep.subr.bf16.mxu0 0
    %1238 = vmatpush1.bf16.msra.mxu0 0
    %1239 = vmatprep.subr.bf16.mxu0 0
    %1240 = vmatpush1.bf16.msra.mxu0 0
    %1241 = vmatprep.subr.bf16.mxu0 0
    %1242 = vmatpush1.bf16.msra.mxu0 0
    %1243 = vmatprep.subr.bf16.mxu0 0
    %1244 = vmatpush1.bf16.msra.mxu0 0
    %1245 = vmatprep.subr.bf16.mxu0 0
    %1246 = vmatpush1.bf16.msra.mxu0 0
    %1247 = vmatprep.subr.bf16.mxu0 0
    %1248 = vmatpush1.bf16.msra.mxu0 0
    %1249 = vmatprep.subr.bf16.mxu0 0
    %1250 = vmatpush1.bf16.msra.mxu0 0
    %1251 = vmatprep.subr.bf16.mxu0 0
    %1252 = vmatpush1.bf16.msra.mxu0 0
    %1253 = vmatprep.subr.bf16.mxu0 0
    %1254 = vmatpush1.bf16.msra.mxu0 0
    %1255 = vmatprep.subr.bf16.mxu0 0
    %1256 = vmatpush1.bf16.msra.mxu0 0
    %1257 = vmatprep.mubr.bf16.mxu0 0
    %1258 = vmatmul.mubr.bf16.gmra.mrb[0].mxu0 %v1223
    %v1259 = vpop.f32.mrb[0].mxu0
    %v1260 = vadd.f32 %v1209, %v1259
    %v1261 = vpop.f32.mrb[0].mxu0
    %v1262 = vpop.f32.mrb[0].mxu0
    %v1263 = vadd.f32 %v1209, %v1262
    %v1264 = vpop.f32.mrb[0].mxu0
    %1265 = vdwg.mxu0
    %v1266 = vmul.f32 %v1260, %v1260
    %v1267 = vmul.f32 %v1263, %v1263
    %v1268 = vmul.f32 %v1260, %v1266
    %v1269 = vmul.f32 %v1263, %v1267
    %v1270 = vmul.f32 %v1268, 0.044715
    %v1271 = vmul.f32 %v1269, 0.044715
    %v1272 = vadd.f32 %v1260, %v1270
    %v1273 = vadd.f32 %v1263, %v1271
    %v1274 = vmul.f32 %v1272, 0.7978846
    %v1275 = vmul.f32 %v1273, 0.7978846
    %v1276 = vtanh.pop %v1274
    %v1277 = vtanh.pop %v1275
    %v1278 = vadd.f32 %v1276, 1.0
    %v1279 = vadd.f32 %v1277, 1.0
    %v1280 = vmul.f32 %v1278, 0.5
    %v1281 = vmul.f32 %v1279, 0.5
    %v1282 = vmul.f32 %v1260, %v1280
    %v1283 = vmul.f32 %v1263, %v1281
    %v1284 = vpack.c.bf16 %v1283, %v1282
    %v1285 = vld [vmem:[%s2 + $0xf0] sm:$0xf]
    %v1286 = vld [vmem:[%s2 + $0xf4] sm:$0xf]
    %v1287 = vld [vmem:[%s2 + $0xf8] sm:$0xf]
    %v1288 = vld [vmem:[%s2 + $0xfc] sm:$0xf]
    %v1289 = vld [vmem:[%s2 + $0x100] sm:$0xf]
    %v1290 = vld [vmem:[%s2 + $0x104] sm:$0xf]
    %v1291 = vld [vmem:[%s2 + $0x108] sm:$0xf]
    %v1292 = vld [vmem:[%s2 + $0x10c] sm:$0xf]
    %v1293 = vld [vmem:[%s2 + $0x110] sm:$0xf]
    %v1294 = vld [vmem:[%s2 + $0x114] sm:$0xf]
    %v1295 = vld [vmem:[%s2 + $0x118] sm:$0xf]
    %v1296 = vld [vmem:[%s2 + $0x11c] sm:$0xf]
    %v1297 = vld [vmem:[%s2 + $0x120] sm:$0xf]
    %v1298 = vld [vmem:[%s2 + $0x124] sm:$0xf]
    %v1299 = vld [vmem:[%s2 + $0x128] sm:$0xf]
    %v1300 = vld [vmem:[%s2 + $0x12c] sm:$0xf]
    %v1317 = vunpack.c.l.b16 %v1285
    %v1318 = vunpack.c.l.b16 %v1286
    %v1319 = vunpack.c.l.b16 %v1287
    %v1320 = vunpack.c.l.b16 %v1288
    %v1321 = vunpack.c.l.b16 %v1289
    %v1322 = vunpack.c.l.b16 %v1290
    %v1323 = vunpack.c.l.b16 %v1291
    %v1324 = vunpack.c.l.b16 %v1292
    %v1325 = vunpack.c.l.b16 %v1293
    %v1326 = vunpack.c.l.b16 %v1294
    %v1327 = vunpack.c.l.b16 %v1295
    %v1328 = vunpack.c.l.b16 %v1296
    %v1329 = vunpack.c.l.b16 %v1297
    %v1330 = vunpack.c.l.b16 %v1298
    %v1331 = vunpack.c.l.b16 %v1299
    %v1332 = vunpack.c.l.b16 %v1300
    %v1333 = vpack.c.b16 %v1318, %v1317
    %v1334 = vpack.c.b16 %v1320, %v1319
    %v1335 = vpack.c.b16 %v1322, %v1321
    %v1336 = vpack.c.b16 %v1324, %v1323
    %v1337 = vpack.c.b16 %v1326, %v1325
    %v1338 = vpack.c.b16 %v1328, %v1327
    %v1339 = vpack.c.b16 %v1330, %v1329
    %v1340 = vpack.c.b16 %v1332, %v1331
    %1349 = vmatprep.subr.bf16.mxu0 0
    %1350 = vmatpush1.bf16.msra.mxu0 %v1333
    %1351 = vmatprep.subr.bf16.mxu0 0
    %1352 = vmatpush1.bf16.msra.mxu0 %v1334
    %1353 = vmatprep.subr.bf16.mxu0 0
    %1354 = vmatpush1.bf16.msra.mxu0 %v1335
    %1355 = vmatprep.subr.bf16.mxu0 0
    %1356 = vmatpush1.bf16.msra.mxu0 %v1336
    %1357 = vmatprep.subr.bf16.mxu0 0
    %1358 = vmatpush1.bf16.msra.mxu0 %v1337
    %1359 = vmatprep.subr.bf16.mxu0 0
    %1360 = vmatpush1.bf16.msra.mxu0 %v1338
    %1361 = vmatprep.subr.bf16.mxu0 0
    %1362 = vmatpush1.bf16.msra.mxu0 %v1339
    %1363 = vmatprep.subr.bf16.mxu0 0
    %1364 = vmatpush1.bf16.msra.mxu0 %v1340
    %1365 = vmatprep.subr.bf16.mxu0 0
    %1366 = vmatpush1.bf16.msra.mxu0 0
    %1367 = vmatprep.subr.bf16.mxu0 0
    %1368 = vmatpush1.bf16.msra.mxu0 0
    %1369 = vmatprep.subr.bf16.mxu0 0
    %1370 = vmatpush1.bf16.msra.mxu0 0
    %1371 = vmatprep.subr.bf16.mxu0 0
    %1372 = vmatpush1.bf16.msra.mxu0 0
    %1373 = vmatprep.subr.bf16.mxu0 0
    %1374 = vmatpush1.bf16.msra.mxu0 0
    %1375 = vmatprep.subr.bf16.mxu0 0
    %1376 = vmatpush1.bf16.msra.mxu0 0
    %1377 = vmatprep.subr.bf16.mxu0 0
    %1378 = vmatpush1.bf16.msra.mxu0 0
    %1379 = vmatprep.subr.bf16.mxu0 0
    %1380 = vmatpush1.bf16.msra.mxu0 0
    %1381 = vmatprep.mubr.bf16.mxu0 0
    %1382 = vmatmul.mubr.bf16.gmra.mrb[0].mxu0 %v1284
    %v1383 = vpop.f32.mrb[0].mxu0
    %v1384 = vadd.f32 0.0, %v1383
    %v1385 = vpop.f32.mrb[0].mxu0
    %v1386 = vpop.f32.mrb[0].mxu0
    %v1387 = vpop.f32.mrb[0].mxu0
    %1388 = vdwg.mxu0
    %v1389 = vadd.f32 %v1161, %v1384
    %v1390 = vlaneseq
    %v1391 = vshrl.u32 %v1390, 7
    %v1392 = vsub.s32 7, %v1391
    %v1393 = vrot.slane %v820, %v1392
    %v1394 = vadd.f32 %v1389, %v1393
    %v1395 = vld [vmem:[%s4 + $0x10] sm:$0x1]
    %v1396 = vld [vmem:[%s4 + $0x11] sm:$0x1]
    %v1397 = vld [vmem:[%s4 + $0x12] sm:$0x1]
    %vm1398 = vcmask 254976
    %v1399 = vsel %vm1398, %v1394, 0.0
    %1400 = vadd.xlane.f32.xlu0 %v1399
    %v1401 = vpop.xlane.xlu0 %1400
    %v1402 = vmul.f32 %v1401, %v192
    %v1403 = vsub.f32 %v1394, %v1402
    %v1404 = vmul.f32 %v1403, %v1403
    %v1405 = vsel %vm1398, %v1404, 0.0
    %1406 = vadd.xlane.f32.xlu0 %v1405
    %v1407 = vpop.xlane.xlu0 %1406
    %v1408 = vmul.f32 %v1407, %v192
    %v1409 = vadd.f32 %v1408, 1e-06
    %v1410 = vrsqrt.pop %v1409
    %v1411 = vmul.f32 %v1403, %v1410
    %v1412 = vlaneseq
    %v1413 = vshrl.u32 %v1412, 7
    %v1414 = vsub.s32 0, %v1413
    %v1415 = vrot.slane %v1395, %v1414
    %v1416 = vmul.f32 %v1411, %v1415
    %v1417 = vlaneseq
    %v1418 = vshrl.u32 %v1417, 7
    %v1419 = vsub.s32 0, %v1418
    %v1420 = vrot.slane %v1396, %v1419
    %v1421 = vadd.f32 %v1416, %v1420
    %v1422 = vpack.c.bf16 %v1421, %v1421
    %v1423 = vld [vmem:[%s2 + $0x60] sm:$0xf]
    %v1424 = vld [vmem:[%s2 + $0x64] sm:$0xf]
    %v1425 = vld [vmem:[%s2 + $0x68] sm:$0xf]
    %v1426 = vld [vmem:[%s2 + $0x6c] sm:$0xf]
    %v1427 = vlaneseq
    %v1428 = vshrl.u32 %v1427, 7
    %v1429 = vsub.s32 0, %v1428
    %v1430 = vrot.slane %v1397, %v1429
    %v1435 = vunpack.c.l.b16 %v1423
    %v1436 = vunpack.c.l.b16 %v1424
    %v1437 = vunpack.c.l.b16 %v1425
    %v1438 = vunpack.c.l.b16 %v1426
    %v1439 = vpack.c.b16 %v1436, %v1435
    %v1440 = vpack.c.b16 %v1438, %v1437
    %v1444 = vsel %vm185, %v1422, 0
    %1446 = vmatprep.subr.bf16.mxu0 0
    %1447 = vmatpush1.bf16.msra.mxu0 %v1439
    %1448 = vmatprep.subr.bf16.mxu0 0
    %1449 = vmatpush1.bf16.msra.mxu0 %v1440
    %1450 = vmatprep.subr.bf16.mxu0 0
    %1451 = vmatpush1.bf16.msra.mxu0 0
    %1452 = vmatprep.subr.bf16.mxu0 0
    %1453 = vmatpush1.bf16.msra.mxu0 0
    %1454 = vmatprep.subr.bf16.mxu0 0
    %1455 = vmatpush1.bf16.msra.mxu0 0
    %1456 = vmatprep.subr.bf16.mxu0 0
    %1457 = vmatpush1.bf16.msra.mxu0 0
    %1458 = vmatprep.subr.bf16.mxu0 0
    %1459 = vmatpush1.bf16.msra.mxu0 0
    %1460 = vmatprep.subr.bf16.mxu0 0
    %1461 = vmatpush1.bf16.msra.mxu0 0
    %1462 = vmatprep.subr.bf16.mxu0 0
    %1463 = vmatpush1.bf16.msra.mxu0 0
    %1464 = vmatprep.subr.bf16.mxu0 0
    %1465 = vmatpush1.bf16.msra.mxu0 0
    %1466 = vmatprep.subr.bf16.mxu0 0
    %1467 = vmatpush1.bf16.msra.mxu0 0
    %1468 = vmatprep.subr.bf16.mxu0 0
    %1469 = vmatpush1.bf16.msra.mxu0 0
    %1470 = vmatprep.subr.bf16.mxu0 0
    %1471 = vmatpush1.bf16.msra.mxu0 0
    %1472 = vmatprep.subr.bf16.mxu0 0
    %1473 = vmatpush1.bf16.msra.mxu0 0
    %1474 = vmatprep.subr.bf16.mxu0 0
    %1475 = vmatpush1.bf16.msra.mxu0 0
    %1476 = vmatprep.subr.bf16.mxu0 0
    %1477 = vmatpush1.bf16.msra.mxu0 0
    %1478 = vmatprep.mubr.bf16.mxu0 0
    %1479 = vmatmul.mubr.bf16.gmra.mrb[0].mxu0 %v1444
    %v1480 = vpop.f32.mrb[0].mxu0
    %v1481 = vadd.f32 %v1430, %v1480
    %v1482 = vpop.f32.mrb[0].mxu0
    %v1483 = vpop.f32.mrb[0].mxu0
    %v1484 = vpop.f32.mrb[0].mxu0
    %1485 = vdwg.mxu0
    %vm1486 = vcmask 74752
    %1487 = vst.msk [vmem:[#allocation2] sm:$0x3] %vm1486, %v1481
    // Predicated region
    $region22: #{vpt_vit_forward.1} parent=1 // pred_check
      _
    $region23: #{vpt_vit_forward.1} parent=1 // pred_check_branch
      %1489 = sbr.rel (0) target = $region25
    $region24: #{vpt_vit_forward.1} parent=1 // pred_region
      %s1491 = ssub.s32 32, 32
      %1492 = vsyncadd [#allocation3], %s1491
      %s1494 = sshll.u32 [#allocation2], 4
      %s1495 = int_to_ptr.vmem [resolvable:$true] %s1494
      %1497 = dma.vmem_to_hbm [thread:$0]  %s1495, 32, %s5, [#allocation3]
    $region25: #{vpt_vit_forward.1} parent=1 // pred_fallthru
      _
    // Predicated region
    $region26: #{vpt_vit_forward.1} parent=1 // pred_check
      _
    $region27: #{vpt_vit_forward.1} parent=1 // pred_check_branch
      %1499 = sbr.rel (0) target = $region29
    $region28: #{vpt_vit_forward.1} parent=1 // pred_region
      %1500 = dma.done [#allocation3], 32
    $region29: #{vpt_vit_forward.1} parent=1 // pred_fallthru
      _
    %1501 = vsyncpa [#allocation3], 1

</llo_original>
